<compile_context>
chip_gen: v7x
topology: tpu7x:2x2x1
jax: 0.10.0
libtpu: 0.0.40
codegen_flags: <defaults>
</compile_context>

<pallas_src>
import functools
import math

import jax
import jax.numpy as jnp
from jax.experimental import pallas as pl
from jax.experimental.pallas import tpu as pltpu

H = 16            # hidden_size in the torch module
ITERS = 3         # graph_iters in the torch module
PAD_IN = 8        # zero-padded width for the 3-wide node input / 2-wide edge attr
SLAB_W = 2 * H    # parameter-slab lane width (32)


def _round8(n):
    return ((n + 7) // 8) * 8


# ----------------------------------------------------------------------------
# Parameter-slab layout: one [SLAB_ROWS, 32] f32 buffer; every entry occupies a
# multiple of 8 rows so all in-kernel slices are sublane-aligned.
# TODO(synk): full 128-lane lane-dense repack (8 heads / row group) not done.
# ----------------------------------------------------------------------------
def _slab_layout():
    layout, off = {}, 0

    def add(name, rows):
        nonlocal off
        layout[name] = (off, rows)
        off += rows

    add("encW", 8)
    add("encb", 8)
    for i in range(ITERS):                       # edge_network[i]
        add(f"eWa{i}", H)        # [eW1a | 0]      (32 lanes)
        add(f"eWb{i}", H)        # [eW1b | I_16]   (32 lanes, x passthrough)
        add(f"eWc{i}", 8)        # [eW1c pad8 | 0]
        add(f"eb1{i}", 8)
        add(f"eW2{i}", H)
        add(f"eb2{i}", 8)
        add(f"eW3{i}", H)        # [H,1] lane-replicated to [H,H]
        add(f"eb3{i}", 8)
    for i in range(ITERS - 1):                   # node_network[i]
        add(f"nW1{i}", 2 * H)    # [nW1a ; nW1b] stacked (K = 2H)
        add(f"nb1{i}", 8)
        add(f"nW2{i}", H)
        add(f"nb2{i}", 8)
        add(f"nW3{i}", H)
        add(f"nb3{i}", 8)
    add("oW1", 2 * H)                            # node_out_network
    add("ob1", 8)
    add("oW2", H)
    add("ob2", 8)
    add("oW3", H)                                # lane-replicated
    add("ob3", 8)
    return layout, off


LAYOUT, SLAB_ROWS = _slab_layout()


# ----------------------------------------------------------------------------
# Pallas kernel: full forward pass (encoder + 3 message-passing iterations)
# ----------------------------------------------------------------------------
def _gnn_kernel(xp_ref, gaug_ref, gsT_ref, w_ref, out_ref, pst_ref):
    f32 = jnp.float32
    bf16 = jnp.bfloat16
    dot = functools.partial(jnp.dot, preferred_element_type=f32)
    relu = lambda v: jnp.maximum(v, 0.0)

    Np = xp_ref.shape[0]

    def Wfull(name):                              # [rows, 32] static row slice
        off, rows = LAYOUT[name]
        return w_ref[off:off + rows, :]

    def W(name):                                  # [rows, 16]
        off, rows = LAYOUT[name]
        return w_ref[off:off + rows, :H]

    def B(name):                                  # bias row [1, 16]
        off, _ = LAYOUT[name]
        return w_ref[off:off + 1, :H]

    # node encoder: Linear(3 -> H), Identity output activation
    x = dot(xp_ref[...], W("encW")) + B("encb")                        # [Np, H] f32

    gaug = gaug_ref[...]      # [Ep, 2*Np + 8] bf16 = [gs | ge | edge_attr(pad)]
    gsT = gsT_ref[...]        # [Np, Ep]      bf16 = one-hot(start)^T

    for i in range(ITERS):
        x0 = x

        # Fused edge layer 1 + x[end] gather in ONE big MXU push:
        #   [gs | ge | ea] @ [[x@eW1a | 0], [x@eW1b | x], [eW1c | 0]]
        #     -> lanes  0:16 = x[start]@eW1a + x[end]@eW1b + ea@eW1c
        #        lanes 16:32 = x[end]                       (gather for free)
        pst_ref[0:Np, :] = dot(x, Wfull(f"eWa{i}"))                    # [Np, 32]
        pst_ref[Np:2 * Np, :] = dot(x, Wfull(f"eWb{i}"))               # [Np, 32]
        pst_ref[2 * Np:2 * Np + PAD_IN, :] = Wfull(f"eWc{i}")          # [8, 32]
        hxe = dot(gaug, pst_ref[...].astype(bf16))                     # [Ep, 32] f32

        xe = hxe[:, H:2 * H]                                           # x[end]
        h = relu(hxe[:, 0:H] + B(f"eb1{i}"))
        h = relu(dot(h, W(f"eW2{i}")) + B(f"eb2{i}"))
        # final edge layer: 1-wide head is lane-replicated, so every lane of the
        # result is the per-edge gate (ReLU then sigmoid, as in torch forward).
        e = jax.nn.sigmoid(relu(dot(h, W(f"eW3{i}")) + B(f"eb3{i}")))  # [Ep, H]

        # scatter_add over edge starts (pre-transposed one-hot matmul)
        msgs = dot(gsT, (xe * e).astype(bf16))                         # [Np, H] f32

        nin = jnp.concatenate([x, msgs], axis=1)                       # [Np, 2H]
        if i == ITERS - 1:
            # node_out_network: Linear+ReLU, Linear+ReLU, Linear+Sigmoid
            h = relu(dot(nin, W("oW1")) + B("ob1"))
            h = relu(dot(h, W("oW2")) + B("ob2"))
            out_ref[...] = jax.nn.sigmoid(dot(h, W("oW3")) + B("ob3"))
        else:
            # node_network[i]: Linear+ReLU x3, plus residual
            h = relu(dot(nin, W(f"nW1{i}")) + B(f"nb1{i}"))
            h = relu(dot(h, W(f"nW2{i}")) + B(f"nb2{i}"))
            h = relu(dot(h, W(f"nW3{i}")) + B(f"nb3{i}"))
            x = h + x0


# ----------------------------------------------------------------------------
# Parameters (deterministic, PyTorch-Linear-style uniform init, stored [in, out])
# ----------------------------------------------------------------------------
def init_params(key):
    keys = iter(jax.random.split(key, 64))

    def linear(fan_in, fan_out):
        bound = 1.0 / math.sqrt(fan_in)
        Wm = jax.random.uniform(next(keys), (fan_in, fan_out), jnp.float32, -bound, bound)
        b = jax.random.uniform(next(keys), (1, fan_out), jnp.float32, -bound, bound)
        return Wm, b

    p = {}
    p["encW"], p["encb"] = linear(3, H)                      # node_encoder

    eW1a, eW1b, eW1c, eb1, eW2, eb2, eW3, eb3 = ([] for _ in range(8))
    for _ in range(ITERS):                                   # edge_network[i]
        W1, b1 = linear(2 * H + 2, H)
        eW1a.append(W1[:H]); eW1b.append(W1[H:2 * H]); eW1c.append(W1[2 * H:]); eb1.append(b1)
        W2, b2 = linear(H, H); eW2.append(W2); eb2.append(b2)
        W3, b3 = linear(H, 1); eW3.append(W3); eb3.append(b3)
    p["eW1a"], p["eW1b"], p["eW1c"] = map(jnp.stack, (eW1a, eW1b, eW1c))
    p["eb1"], p["eW2"], p["eb2"] = map(jnp.stack, (eb1, eW2, eb2))
    p["eW3"], p["eb3"] = map(jnp.stack, (eW3, eb3))

    nW1a, nW1b, nb1, nW2, nb2, nW3, nb3 = ([] for _ in range(7))
    for _ in range(ITERS - 1):                               # node_network[i]
        W1, b1 = linear(2 * H, H)
        nW1a.append(W1[:H]); nW1b.append(W1[H:]); nb1.append(b1)
        W2, b2 = linear(H, H); nW2.append(W2); nb2.append(b2)
        W3, b3 = linear(H, H); nW3.append(W3); nb3.append(b3)
    p["nW1a"], p["nW1b"], p["nb1"] = map(jnp.stack, (nW1a, nW1b, nb1))
    p["nW2"], p["nb2"] = map(jnp.stack, (nW2, nb2))
    p["nW3"], p["nb3"] = map(jnp.stack, (nW3, nb3))

    W1, b1 = linear(2 * H, H)                                # node_out_network
    p["oW1a"], p["oW1b"], p["ob1"] = W1[:H], W1[H:], b1
    p["oW2"], p["ob2"] = linear(H, H)
    p["oW3"], p["ob3"] = linear(H, 1)
    return p


# ----------------------------------------------------------------------------
# Pack every parameter into one [SLAB_ROWS, 32] f32 slab (single HBM->VMEM DMA).
# eWa/eWb hold the fused 32-lane edge-layer-1 RHS pieces (identity passthrough),
# nW1/oW1 are the vertically stacked K=32 layer-1 weights, and the 1-wide
# output heads are lane-replicated so the kernel never emits 1-lane data.
# ----------------------------------------------------------------------------
def pack_params(p):
    eye = jnp.eye(H, dtype=jnp.float32)
    zH = jnp.zeros((H, H), jnp.float32)

    entries = {"encW": p["encW"], "encb": p["encb"]}
    for i in range(ITERS):
        entries[f"eWa{i}"] = jnp.concatenate([p["eW1a"][i], zH], axis=1)    # [16,32]
        entries[f"eWb{i}"] = jnp.concatenate([p["eW1b"][i], eye], axis=1)   # [16,32]
        entries[f"eWc{i}"] = p["eW1c"][i]                                   # [2,16]
        entries[f"eb1{i}"] = p["eb1"][i]
        entries[f"eW2{i}"] = p["eW2"][i]
        entries[f"eb2{i}"] = p["eb2"][i]
        entries[f"eW3{i}"] = jnp.tile(p["eW3"][i], (1, H))                  # [16,1]->[16,16]
        entries[f"eb3{i}"] = jnp.tile(p["eb3"][i], (1, H))
    for i in range(ITERS - 1):
        entries[f"nW1{i}"] = jnp.concatenate([p["nW1a"][i], p["nW1b"][i]], axis=0)  # [32,16]
        entries[f"nb1{i}"] = p["nb1"][i]
        entries[f"nW2{i}"] = p["nW2"][i]
        entries[f"nb2{i}"] = p["nb2"][i]
        entries[f"nW3{i}"] = p["nW3"][i]
        entries[f"nb3{i}"] = p["nb3"][i]
    entries["oW1"] = jnp.concatenate([p["oW1a"], p["oW1b"]], axis=0)        # [32,16]
    entries["ob1"] = p["ob1"]
    entries["oW2"] = p["oW2"]
    entries["ob2"] = p["ob2"]
    entries["oW3"] = jnp.tile(p["oW3"], (1, H))
    entries["ob3"] = jnp.tile(p["ob3"], (1, H))

    slab = jnp.zeros((SLAB_ROWS, SLAB_W), jnp.float32)
    for name, mat in entries.items():
        off, rows = LAYOUT[name]
        mat = jnp.asarray(mat, jnp.float32)
        mat = jnp.pad(mat, ((0, rows - mat.shape[0]), (0, SLAB_W - mat.shape[1])))
        slab = slab.at[off:off + rows].set(mat)
    return slab


def _vmem_limit_bytes():
    # Chip-aware VMEM limit: ~3/4 of physical (v5e/v6e: 128 MiB, v7x: 64 MiB),
    # capped, falling back to the previous safe default if the query fails.
    try:
        cap = getattr(pltpu.get_tpu_info(), "vmem_capacity_bytes", None)
        if cap:
            return int(min(cap * 3 // 4, 100 * 1024 * 1024))
    except Exception:
        pass
    return 32 * 1024 * 1024


# ----------------------------------------------------------------------------
# Wrapper: build (padded, bf16) one-hot gather/scatter matrices + packed
# weights, run the fused Pallas kernel once over the whole (small) graph.
# ----------------------------------------------------------------------------
def custom_gnn_pallas(params, x, edge_index, edge_attr):
    N, E = x.shape[0], edge_index.shape[1]
    Np, Ep = _round8(N), _round8(E)

    start = jnp.pad(jnp.asarray(edge_index[0], jnp.int32), (0, Ep - E), constant_values=-1)
    end = jnp.pad(jnp.asarray(edge_index[1], jnp.int32), (0, Ep - E), constant_values=-1)
    node_ids = jnp.arange(Np, dtype=jnp.int32)

    # One-hot gather / scatter operators (0/1 values: exact in bf16).
    gs = (start[:, None] == node_ids[None, :]).astype(jnp.float32)      # [Ep, Np]
    ge = (end[:, None] == node_ids[None, :]).astype(jnp.float32)        # [Ep, Np]
    gsT = (node_ids[:, None] == start[None, :]).astype(jnp.bfloat16)    # [Np, Ep]

    ea = jnp.asarray(edge_attr, jnp.float32)
    ea_p = jnp.pad(ea, ((0, Ep - E), (0, PAD_IN - ea.shape[1])))         # [Ep, 8]
    gaug = jnp.concatenate([gs, ge, ea_p], axis=1).astype(jnp.bfloat16)  # [Ep, 2Np+8]

    xp = jnp.pad(jnp.asarray(x, jnp.float32),
                 ((0, Np - N), (0, PAD_IN - x.shape[1])))                # [Np, 8]

    slab = pack_params(params)                                           # [rows, 32]

    # Advisory cost estimate so XLA schedules the one-hot/padding ops sensibly.
    fused = 2 * Ep * (2 * Np + PAD_IN) * SLAB_W
    pstack = 2 * Np * H * SLAB_W * 2
    echain = 2 * Ep * H * H * 2
    scatter = 2 * Np * Ep * H
    nchain = 2 * Np * (2 * H + H + H) * H
    cost = pl.CostEstimate(
        flops=2 * Np * PAD_IN * H + ITERS * (fused + pstack + echain + scatter + nchain),
        transcendentals=ITERS * Ep * H + Np * H,
        bytes_accessed=(xp.size * 4 + gaug.size * 2 + gsT.size * 2
                        + slab.size * 4 + Np * H * 4),
    )

    out = pl.pallas_call(
        _gnn_kernel,
        out_shape=jax.ShapeDtypeStruct((Np, H), jnp.float32),
        in_specs=[pl.BlockSpec(memory_space=pltpu.MemorySpace.VMEM)] * 4,
        out_specs=pl.BlockSpec(memory_space=pltpu.MemorySpace.VMEM),
        scratch_shapes=[pltpu.VMEM((2 * Np + PAD_IN, SLAB_W), jnp.float32)],
        compiler_params=pltpu.CompilerParams(vmem_limit_bytes=_vmem_limit_bytes()),
        cost_estimate=cost,
    )(xp, gaug, gsT, slab)

    return out[:N, :1]            # every lane of a row holds the same sigmoid


# ----------------------------------------------------------------------------
# Pure-JAX reference (mirrors the torch forward exactly) for verification.
# ----------------------------------------------------------------------------
def gnn_reference(p, x, edge_index, edge_attr):
    relu = jax.nn.relu
    start, end = edge_index[0], edge_index[1]
    N = x.shape[0]
    x = x @ p["encW"] + p["encb"]
    for i in range(ITERS):
        x0 = x
        ei = jnp.concatenate([x[start], x[end], edge_attr], axis=1)
        W1 = jnp.concatenate([p["eW1a"][i], p["eW1b"][i], p["eW1c"][i]], axis=0)
        h = relu(ei @ W1 + p["eb1"][i])
        h = relu(h @ p["eW2"][i] + p["eb2"][i])
        e = jax.nn.sigmoid(relu(h @ p["eW3"][i] + p["eb3"][i]))
        msgs = jax.ops.segment_sum(x[end] * e, start, num_segments=N)
        ni = jnp.concatenate([x, msgs], axis=1)
        if i == ITERS - 1:
            W1o = jnp.concatenate([p["oW1a"], p["oW1b"]], axis=0)
            h = relu(ni @ W1o + p["ob1"])
            h = relu(h @ p["oW2"] + p["ob2"])
            x = jax.nn.sigmoid(h @ p["oW3"] + p["ob3"])
        else:
            W1n = jnp.concatenate([p["nW1a"][i], p["nW1b"][i]], axis=0)
            h = relu(ni @ W1n + p["nb1"][i])
            h = relu(h @ p["nW2"][i] + p["nb2"][i])
            h = relu(h @ p["nW3"][i] + p["nb3"][i])
            x = h + x0
    return x


if __name__ == "__main__":
    key = jax.random.PRNGKey(0)
    kx, ke, ka, kp = jax.random.split(key, 4)

    N, E = 8, 16
    x = jax.random.normal(kx, (N, 3), jnp.float32)
    edge_index = jax.random.randint(ke, (2, E), 0, N, dtype=jnp.int32)
    edge_attr = jax.random.normal(ka, (E, 2), jnp.float32)
    params = init_params(kp)

    out = custom_gnn_pallas(params, x, edge_index, edge_attr)
    out = jax.block_until_ready(out)

    ref = gnn_reference(params, x, edge_index, edge_attr)
    assert out.shape == (N, 1)
    assert bool(jnp.all(jnp.isfinite(out)))
    # bf16 gather/scatter path: one-hot matmuls are exact, edge_attr and the
    # fused-dot activations round to bf16 -> slightly looser tolerance than f32.
    assert bool(jnp.allclose(out, ref, atol=2e-2, rtol=2e-2))

    print("KERNEL_OK")
</pallas_src>

<mosaic_0001>
module attributes {stable_mosaic.version = 11 : i64} {
  func.func @_gnn_kernel(%arg0: memref<8x8xf32, #tpu.memory_space<vmem>>, %arg1: memref<16x24xbf16, #tpu.memory_space<vmem>>, %arg2: memref<8x16xbf16, #tpu.memory_space<vmem>>, %arg3: memref<568x32xf32, #tpu.memory_space<vmem>>, %arg4: memref<8x16xf32, #tpu.memory_space<vmem>>, %arg5: memref<24x32xf32, #tpu.memory_space<vmem>>) attributes {dimension_semantics = [], scalar_prefetch = 0 : i64, scratch_operands = 1 : i64, tpu.core_type = #tpu.core_type<tc>} {
    %c0 = arith.constant 0 : index
    %c0_0 = arith.constant 0 : index
    %0 = vector.load %arg0[%c0, %c0_0] : memref<8x8xf32, #tpu.memory_space<vmem>>, vector<8x8xf32>
    %c0_1 = arith.constant 0 : index
    %c0_2 = arith.constant 0 : index
    %1 = vector.load %arg3[%c0_1, %c0_2] : memref<568x32xf32, #tpu.memory_space<vmem>>, vector<8x16xf32>
    %cst = arith.constant dense<0.000000e+00> : vector<8x16xf32>
    %2 = tpu.matmul %0, %1, %cst {dimension_numbers = #tpu.dot_dimension_numbers<[1], [0], [0], [1], [0, 0, 1, 1], [], []>} : vector<8x8xf32>, vector<8x16xf32>, vector<8x16xf32> -> vector<8x16xf32>
    %c8 = arith.constant 8 : index
    %c0_3 = arith.constant 0 : index
    %3 = vector.load %arg3[%c8, %c0_3] : memref<568x32xf32, #tpu.memory_space<vmem>>, vector<1x16xf32>
    %4 = vector.broadcast %3 : vector<1x16xf32> to vector<8x16xf32>
    %5 = arith.addf %2, %4 : vector<8x16xf32>
    %c0_4 = arith.constant 0 : index
    %c0_5 = arith.constant 0 : index
    %6 = vector.load %arg1[%c0_4, %c0_5] : memref<16x24xbf16, #tpu.memory_space<vmem>>, vector<16x24xbf16>
    %c0_6 = arith.constant 0 : index
    %c0_7 = arith.constant 0 : index
    %7 = vector.load %arg2[%c0_6, %c0_7] : memref<8x16xbf16, #tpu.memory_space<vmem>>, vector<8x16xbf16>
    %c16 = arith.constant 16 : index
    %c0_8 = arith.constant 0 : index
    %8 = vector.load %arg3[%c16, %c0_8] : memref<568x32xf32, #tpu.memory_space<vmem>>, vector<16x32xf32>
    %cst_9 = arith.constant dense<0.000000e+00> : vector<8x32xf32>
    %9 = tpu.matmul %5, %8, %cst_9 {dimension_numbers = #tpu.dot_dimension_numbers<[1], [0], [0], [1], [0, 0, 1, 1], [], []>} : vector<8x16xf32>, vector<16x32xf32>, vector<8x32xf32> -> vector<8x32xf32>
    %c0_10 = arith.constant 0 : index
    %c0_11 = arith.constant 0 : index
    %10 = vector.load %arg5[%c0_10, %c0_11] : memref<24x32xf32, #tpu.memory_space<vmem>>, vector<8x32xf32>
    tpu.vector_store %arg5[%c0_10, %c0_11], %9 {strides = array<i32>} : memref<24x32xf32, #tpu.memory_space<vmem>>, vector<8x32xf32>,
    %c32 = arith.constant 32 : index
    %c0_12 = arith.constant 0 : index
    %11 = vector.load %arg3[%c32, %c0_12] : memref<568x32xf32, #tpu.memory_space<vmem>>, vector<16x32xf32>
    %cst_13 = arith.constant dense<0.000000e+00> : vector<8x32xf32>
    %12 = tpu.matmul %5, %11, %cst_13 {dimension_numbers = #tpu.dot_dimension_numbers<[1], [0], [0], [1], [0, 0, 1, 1], [], []>} : vector<8x16xf32>, vector<16x32xf32>, vector<8x32xf32> -> vector<8x32xf32>
    %c8_14 = arith.constant 8 : index
    %c0_15 = arith.constant 0 : index
    %13 = vector.load %arg5[%c8_14, %c0_15] : memref<24x32xf32, #tpu.memory_space<vmem>>, vector<8x32xf32>
    tpu.vector_store %arg5[%c8_14, %c0_15], %12 {strides = array<i32>} : memref<24x32xf32, #tpu.memory_space<vmem>>, vector<8x32xf32>,
    %c48 = arith.constant 48 : index
    %c0_16 = arith.constant 0 : index
    %14 = vector.load %arg3[%c48, %c0_16] : memref<568x32xf32, #tpu.memory_space<vmem>>, vector<8x32xf32>
    %c16_17 = arith.constant 16 : index
    %c0_18 = arith.constant 0 : index
    %15 = vector.load %arg5[%c16_17, %c0_18] : memref<24x32xf32, #tpu.memory_space<vmem>>, vector<8x32xf32>
    tpu.vector_store %arg5[%c16_17, %c0_18], %14 {strides = array<i32>} : memref<24x32xf32, #tpu.memory_space<vmem>>, vector<8x32xf32>,
    %c0_19 = arith.constant 0 : index
    %c0_20 = arith.constant 0 : index
    %16 = vector.load %arg5[%c0_19, %c0_20] : memref<24x32xf32, #tpu.memory_space<vmem>>, vector<24x32xf32>
    %17 = arith.truncf %16 : vector<24x32xf32> to vector<24x32xbf16>
    %cst_21 = arith.constant dense<0.000000e+00> : vector<16x32xf32>
    %18 = tpu.matmul %6, %17, %cst_21 {dimension_numbers = #tpu.dot_dimension_numbers<[1], [0], [0], [1], [0, 0, 1, 1], [], []>} : vector<16x24xbf16>, vector<24x32xbf16>, vector<16x32xf32> -> vector<16x32xf32>
    %19 = vector.extract_strided_slice %18 {offsets = [0, 16], sizes = [16, 16], strides = [1, 1]} : vector<16x32xf32> to vector<16x16xf32>
    %20 = vector.extract_strided_slice %18 {offsets = [0, 0], sizes = [16, 16], strides = [1, 1]} : vector<16x32xf32> to vector<16x16xf32>
    %c56 = arith.constant 56 : index
    %c0_22 = arith.constant 0 : index
    %21 = vector.load %arg3[%c56, %c0_22] : memref<568x32xf32, #tpu.memory_space<vmem>>, vector<1x16xf32>
    %22 = vector.broadcast %21 : vector<1x16xf32> to vector<16x16xf32>
    %23 = arith.addf %20, %22 : vector<16x16xf32>
    %cst_23 = arith.constant 0.000000e+00 : f32
    %24 = vector.broadcast %cst_23 : f32 to vector<16x16xf32>
    %25 = arith.maximumf %23, %24 : vector<16x16xf32>
    %c64 = arith.constant 64 : index
    %c0_24 = arith.constant 0 : index
    %26 = vector.load %arg3[%c64, %c0_24] : memref<568x32xf32, #tpu.memory_space<vmem>>, vector<16x16xf32>
    %cst_25 = arith.constant dense<0.000000e+00> : vector<16x16xf32>
    %27 = tpu.matmul %25, %26, %cst_25 {dimension_numbers = #tpu.dot_dimension_numbers<[1], [0], [0], [1], [0, 0, 1, 1], [], []>} : vector<16x16xf32>, vector<16x16xf32>, vector<16x16xf32> -> vector<16x16xf32>
    %c80 = arith.constant 80 : index
    %c0_26 = arith.constant 0 : index
    %28 = vector.load %arg3[%c80, %c0_26] : memref<568x32xf32, #tpu.memory_space<vmem>>, vector<1x16xf32>
    %29 = vector.broadcast %28 : vector<1x16xf32> to vector<16x16xf32>
    %30 = arith.addf %27, %29 : vector<16x16xf32>
    %cst_27 = arith.constant 0.000000e+00 : f32
    %31 = vector.broadcast %cst_27 : f32 to vector<16x16xf32>
    %32 = arith.maximumf %30, %31 : vector<16x16xf32>
    %c88 = arith.constant 88 : index
    %c0_28 = arith.constant 0 : index
    %33 = vector.load %arg3[%c88, %c0_28] : memref<568x32xf32, #tpu.memory_space<vmem>>, vector<16x16xf32>
    %cst_29 = arith.constant dense<0.000000e+00> : vector<16x16xf32>
    %34 = tpu.matmul %32, %33, %cst_29 {dimension_numbers = #tpu.dot_dimension_numbers<[1], [0], [0], [1], [0, 0, 1, 1], [], []>} : vector<16x16xf32>, vector<16x16xf32>, vector<16x16xf32> -> vector<16x16xf32>
    %c104 = arith.constant 104 : index
    %c0_30 = arith.constant 0 : index
    %35 = vector.load %arg3[%c104, %c0_30] : memref<568x32xf32, #tpu.memory_space<vmem>>, vector<1x16xf32>
    %36 = vector.broadcast %35 : vector<1x16xf32> to vector<16x16xf32>
    %37 = arith.addf %34, %36 : vector<16x16xf32>
    %cst_31 = arith.constant 0.000000e+00 : f32
    %38 = vector.broadcast %cst_31 : f32 to vector<16x16xf32>
    %39 = arith.maximumf %37, %38 : vector<16x16xf32>
    %40 = arith.negf %39 : vector<16x16xf32>
    %41 = math.exp %40 : vector<16x16xf32>
    %cst_32 = arith.constant 1.000000e+00 : f32
    %42 = vector.broadcast %cst_32 : f32 to vector<16x16xf32>
    %43 = arith.addf %42, %41 : vector<16x16xf32>
    %44 = arith.divf %42, %43 : vector<16x16xf32>
    %45 = arith.mulf %19, %44 : vector<16x16xf32>
    %46 = arith.truncf %45 : vector<16x16xf32> to vector<16x16xbf16>
    %cst_33 = arith.constant dense<0.000000e+00> : vector<8x16xf32>
    %47 = tpu.matmul %7, %46, %cst_33 {dimension_numbers = #tpu.dot_dimension_numbers<[1], [0], [0], [1], [0, 0, 1, 1], [], []>} : vector<8x16xbf16>, vector<16x16xbf16>, vector<8x16xf32> -> vector<8x16xf32>
    %48 = tpu.concatenate %5, %47 in 1 : vector<8x16xf32>, vector<8x16xf32> -> vector<8x32xf32>
    %c304 = arith.constant 304 : index
    %c0_34 = arith.constant 0 : index
    %49 = vector.load %arg3[%c304, %c0_34] : memref<568x32xf32, #tpu.memory_space<vmem>>, vector<32x16xf32>
    %cst_35 = arith.constant dense<0.000000e+00> : vector<8x16xf32>
    %50 = tpu.matmul %48, %49, %cst_35 {dimension_numbers = #tpu.dot_dimension_numbers<[1], [0], [0], [1], [0, 0, 1, 1], [], []>} : vector<8x32xf32>, vector<32x16xf32>, vector<8x16xf32> -> vector<8x16xf32>
    %c336 = arith.constant 336 : index
    %c0_36 = arith.constant 0 : index
    %51 = vector.load %arg3[%c336, %c0_36] : memref<568x32xf32, #tpu.memory_space<vmem>>, vector<1x16xf32>
    %52 = vector.broadcast %51 : vector<1x16xf32> to vector<8x16xf32>
    %53 = arith.addf %50, %52 : vector<8x16xf32>
    %cst_37 = arith.constant 0.000000e+00 : f32
    %54 = vector.broadcast %cst_37 : f32 to vector<8x16xf32>
    %55 = arith.maximumf %53, %54 : vector<8x16xf32>
    %c344 = arith.constant 344 : index
    %c0_38 = arith.constant 0 : index
    %56 = vector.load %arg3[%c344, %c0_38] : memref<568x32xf32, #tpu.memory_space<vmem>>, vector<16x16xf32>
    %cst_39 = arith.constant dense<0.000000e+00> : vector<8x16xf32>
    %57 = tpu.matmul %55, %56, %cst_39 {dimension_numbers = #tpu.dot_dimension_numbers<[1], [0], [0], [1], [0, 0, 1, 1], [], []>} : vector<8x16xf32>, vector<16x16xf32>, vector<8x16xf32> -> vector<8x16xf32>
    %c360 = arith.constant 360 : index
    %c0_40 = arith.constant 0 : index
    %58 = vector.load %arg3[%c360, %c0_40] : memref<568x32xf32, #tpu.memory_space<vmem>>, vector<1x16xf32>
    %59 = vector.broadcast %58 : vector<1x16xf32> to vector<8x16xf32>
    %60 = arith.addf %57, %59 : vector<8x16xf32>
    %cst_41 = arith.constant 0.000000e+00 : f32
    %61 = vector.broadcast %cst_41 : f32 to vector<8x16xf32>
    %62 = arith.maximumf %60, %61 : vector<8x16xf32>
    %c368 = arith.constant 368 : index
    %c0_42 = arith.constant 0 : index
    %63 = vector.load %arg3[%c368, %c0_42] : memref<568x32xf32, #tpu.memory_space<vmem>>, vector<16x16xf32>
    %cst_43 = arith.constant dense<0.000000e+00> : vector<8x16xf32>
    %64 = tpu.matmul %62, %63, %cst_43 {dimension_numbers = #tpu.dot_dimension_numbers<[1], [0], [0], [1], [0, 0, 1, 1], [], []>} : vector<8x16xf32>, vector<16x16xf32>, vector<8x16xf32> -> vector<8x16xf32>
    %c384 = arith.constant 384 : index
    %c0_44 = arith.constant 0 : index
    %65 = vector.load %arg3[%c384, %c0_44] : memref<568x32xf32, #tpu.memory_space<vmem>>, vector<1x16xf32>
    %66 = vector.broadcast %65 : vector<1x16xf32> to vector<8x16xf32>
    %67 = arith.addf %64, %66 : vector<8x16xf32>
    %cst_45 = arith.constant 0.000000e+00 : f32
    %68 = vector.broadcast %cst_45 : f32 to vector<8x16xf32>
    %69 = arith.maximumf %67, %68 : vector<8x16xf32>
    %70 = arith.addf %69, %5 : vector<8x16xf32>
    %c112 = arith.constant 112 : index
    %c0_46 = arith.constant 0 : index
    %71 = vector.load %arg3[%c112, %c0_46] : memref<568x32xf32, #tpu.memory_space<vmem>>, vector<16x32xf32>
    %cst_47 = arith.constant dense<0.000000e+00> : vector<8x32xf32>
    %72 = tpu.matmul %70, %71, %cst_47 {dimension_numbers = #tpu.dot_dimension_numbers<[1], [0], [0], [1], [0, 0, 1, 1], [], []>} : vector<8x16xf32>, vector<16x32xf32>, vector<8x32xf32> -> vector<8x32xf32>
    %c0_48 = arith.constant 0 : index
    %c0_49 = arith.constant 0 : index
    %73 = vector.load %arg5[%c0_48, %c0_49] : memref<24x32xf32, #tpu.memory_space<vmem>>, vector<8x32xf32>
    tpu.vector_store %arg5[%c0_48, %c0_49], %72 {strides = array<i32>} : memref<24x32xf32, #tpu.memory_space<vmem>>, vector<8x32xf32>,
    %c128 = arith.constant 128 : index
    %c0_50 = arith.constant 0 : index
    %74 = vector.load %arg3[%c128, %c0_50] : memref<568x32xf32, #tpu.memory_space<vmem>>, vector<16x32xf32>
    %cst_51 = arith.constant dense<0.000000e+00> : vector<8x32xf32>
    %75 = tpu.matmul %70, %74, %cst_51 {dimension_numbers = #tpu.dot_dimension_numbers<[1], [0], [0], [1], [0, 0, 1, 1], [], []>} : vector<8x16xf32>, vector<16x32xf32>, vector<8x32xf32> -> vector<8x32xf32>
    %c8_52 = arith.constant 8 : index
    %c0_53 = arith.constant 0 : index
    %76 = vector.load %arg5[%c8_52, %c0_53] : memref<24x32xf32, #tpu.memory_space<vmem>>, vector<8x32xf32>
    tpu.vector_store %arg5[%c8_52, %c0_53], %75 {strides = array<i32>} : memref<24x32xf32, #tpu.memory_space<vmem>>, vector<8x32xf32>,
    %c144 = arith.constant 144 : index
    %c0_54 = arith.constant 0 : index
    %77 = vector.load %arg3[%c144, %c0_54] : memref<568x32xf32, #tpu.memory_space<vmem>>, vector<8x32xf32>
    %c16_55 = arith.constant 16 : index
    %c0_56 = arith.constant 0 : index
    %78 = vector.load %arg5[%c16_55, %c0_56] : memref<24x32xf32, #tpu.memory_space<vmem>>, vector<8x32xf32>
    tpu.vector_store %arg5[%c16_55, %c0_56], %77 {strides = array<i32>} : memref<24x32xf32, #tpu.memory_space<vmem>>, vector<8x32xf32>,
    %c0_57 = arith.constant 0 : index
    %c0_58 = arith.constant 0 : index
    %79 = vector.load %arg5[%c0_57, %c0_58] : memref<24x32xf32, #tpu.memory_space<vmem>>, vector<24x32xf32>
    %80 = arith.truncf %79 : vector<24x32xf32> to vector<24x32xbf16>
    %cst_59 = arith.constant dense<0.000000e+00> : vector<16x32xf32>
    %81 = tpu.matmul %6, %80, %cst_59 {dimension_numbers = #tpu.dot_dimension_numbers<[1], [0], [0], [1], [0, 0, 1, 1], [], []>} : vector<16x24xbf16>, vector<24x32xbf16>, vector<16x32xf32> -> vector<16x32xf32>
    %82 = vector.extract_strided_slice %81 {offsets = [0, 16], sizes = [16, 16], strides = [1, 1]} : vector<16x32xf32> to vector<16x16xf32>
    %83 = vector.extract_strided_slice %81 {offsets = [0, 0], sizes = [16, 16], strides = [1, 1]} : vector<16x32xf32> to vector<16x16xf32>
    %c152 = arith.constant 152 : index
    %c0_60 = arith.constant 0 : index
    %84 = vector.load %arg3[%c152, %c0_60] : memref<568x32xf32, #tpu.memory_space<vmem>>, vector<1x16xf32>
    %85 = vector.broadcast %84 : vector<1x16xf32> to vector<16x16xf32>
    %86 = arith.addf %83, %85 : vector<16x16xf32>
    %cst_61 = arith.constant 0.000000e+00 : f32
    %87 = vector.broadcast %cst_61 : f32 to vector<16x16xf32>
    %88 = arith.maximumf %86, %87 : vector<16x16xf32>
    %c160 = arith.constant 160 : index
    %c0_62 = arith.constant 0 : index
    %89 = vector.load %arg3[%c160, %c0_62] : memref<568x32xf32, #tpu.memory_space<vmem>>, vector<16x16xf32>
    %cst_63 = arith.constant dense<0.000000e+00> : vector<16x16xf32>
    %90 = tpu.matmul %88, %89, %cst_63 {dimension_numbers = #tpu.dot_dimension_numbers<[1], [0], [0], [1], [0, 0, 1, 1], [], []>} : vector<16x16xf32>, vector<16x16xf32>, vector<16x16xf32> -> vector<16x16xf32>
    %c176 = arith.constant 176 : index
    %c0_64 = arith.constant 0 : index
    %91 = vector.load %arg3[%c176, %c0_64] : memref<568x32xf32, #tpu.memory_space<vmem>>, vector<1x16xf32>
    %92 = vector.broadcast %91 : vector<1x16xf32> to vector<16x16xf32>
    %93 = arith.addf %90, %92 : vector<16x16xf32>
    %cst_65 = arith.constant 0.000000e+00 : f32
    %94 = vector.broadcast %cst_65 : f32 to vector<16x16xf32>
    %95 = arith.maximumf %93, %94 : vector<16x16xf32>
    %c184 = arith.constant 184 : index
    %c0_66 = arith.constant 0 : index
    %96 = vector.load %arg3[%c184, %c0_66] : memref<568x32xf32, #tpu.memory_space<vmem>>, vector<16x16xf32>
    %cst_67 = arith.constant dense<0.000000e+00> : vector<16x16xf32>
    %97 = tpu.matmul %95, %96, %cst_67 {dimension_numbers = #tpu.dot_dimension_numbers<[1], [0], [0], [1], [0, 0, 1, 1], [], []>} : vector<16x16xf32>, vector<16x16xf32>, vector<16x16xf32> -> vector<16x16xf32>
    %c200 = arith.constant 200 : index
    %c0_68 = arith.constant 0 : index
    %98 = vector.load %arg3[%c200, %c0_68] : memref<568x32xf32, #tpu.memory_space<vmem>>, vector<1x16xf32>
    %99 = vector.broadcast %98 : vector<1x16xf32> to vector<16x16xf32>
    %100 = arith.addf %97, %99 : vector<16x16xf32>
    %cst_69 = arith.constant 0.000000e+00 : f32
    %101 = vector.broadcast %cst_69 : f32 to vector<16x16xf32>
    %102 = arith.maximumf %100, %101 : vector<16x16xf32>
    %103 = arith.negf %102 : vector<16x16xf32>
    %104 = math.exp %103 : vector<16x16xf32>
    %cst_70 = arith.constant 1.000000e+00 : f32
    %105 = vector.broadcast %cst_70 : f32 to vector<16x16xf32>
    %106 = arith.addf %105, %104 : vector<16x16xf32>
    %107 = arith.divf %105, %106 : vector<16x16xf32>
    %108 = arith.mulf %82, %107 : vector<16x16xf32>
    %109 = arith.truncf %108 : vector<16x16xf32> to vector<16x16xbf16>
    %cst_71 = arith.constant dense<0.000000e+00> : vector<8x16xf32>
    %110 = tpu.matmul %7, %109, %cst_71 {dimension_numbers = #tpu.dot_dimension_numbers<[1], [0], [0], [1], [0, 0, 1, 1], [], []>} : vector<8x16xbf16>, vector<16x16xbf16>, vector<8x16xf32> -> vector<8x16xf32>
    %111 = tpu.concatenate %70, %110 in 1 : vector<8x16xf32>, vector<8x16xf32> -> vector<8x32xf32>
    %c392 = arith.constant 392 : index
    %c0_72 = arith.constant 0 : index
    %112 = vector.load %arg3[%c392, %c0_72] : memref<568x32xf32, #tpu.memory_space<vmem>>, vector<32x16xf32>
    %cst_73 = arith.constant dense<0.000000e+00> : vector<8x16xf32>
    %113 = tpu.matmul %111, %112, %cst_73 {dimension_numbers = #tpu.dot_dimension_numbers<[1], [0], [0], [1], [0, 0, 1, 1], [], []>} : vector<8x32xf32>, vector<32x16xf32>, vector<8x16xf32> -> vector<8x16xf32>
    %c424 = arith.constant 424 : index
    %c0_74 = arith.constant 0 : index
    %114 = vector.load %arg3[%c424, %c0_74] : memref<568x32xf32, #tpu.memory_space<vmem>>, vector<1x16xf32>
    %115 = vector.broadcast %114 : vector<1x16xf32> to vector<8x16xf32>
    %116 = arith.addf %113, %115 : vector<8x16xf32>
    %cst_75 = arith.constant 0.000000e+00 : f32
    %117 = vector.broadcast %cst_75 : f32 to vector<8x16xf32>
    %118 = arith.maximumf %116, %117 : vector<8x16xf32>
    %c432 = arith.constant 432 : index
    %c0_76 = arith.constant 0 : index
    %119 = vector.load %arg3[%c432, %c0_76] : memref<568x32xf32, #tpu.memory_space<vmem>>, vector<16x16xf32>
    %cst_77 = arith.constant dense<0.000000e+00> : vector<8x16xf32>
    %120 = tpu.matmul %118, %119, %cst_77 {dimension_numbers = #tpu.dot_dimension_numbers<[1], [0], [0], [1], [0, 0, 1, 1], [], []>} : vector<8x16xf32>, vector<16x16xf32>, vector<8x16xf32> -> vector<8x16xf32>
    %c448 = arith.constant 448 : index
    %c0_78 = arith.constant 0 : index
    %121 = vector.load %arg3[%c448, %c0_78] : memref<568x32xf32, #tpu.memory_space<vmem>>, vector<1x16xf32>
    %122 = vector.broadcast %121 : vector<1x16xf32> to vector<8x16xf32>
    %123 = arith.addf %120, %122 : vector<8x16xf32>
    %cst_79 = arith.constant 0.000000e+00 : f32
    %124 = vector.broadcast %cst_79 : f32 to vector<8x16xf32>
    %125 = arith.maximumf %123, %124 : vector<8x16xf32>
    %c456 = arith.constant 456 : index
    %c0_80 = arith.constant 0 : index
    %126 = vector.load %arg3[%c456, %c0_80] : memref<568x32xf32, #tpu.memory_space<vmem>>, vector<16x16xf32>
    %cst_81 = arith.constant dense<0.000000e+00> : vector<8x16xf32>
    %127 = tpu.matmul %125, %126, %cst_81 {dimension_numbers = #tpu.dot_dimension_numbers<[1], [0], [0], [1], [0, 0, 1, 1], [], []>} : vector<8x16xf32>, vector<16x16xf32>, vector<8x16xf32> -> vector<8x16xf32>
    %c472 = arith.constant 472 : index
    %c0_82 = arith.constant 0 : index
    %128 = vector.load %arg3[%c472, %c0_82] : memref<568x32xf32, #tpu.memory_space<vmem>>, vector<1x16xf32>
    %129 = vector.broadcast %128 : vector<1x16xf32> to vector<8x16xf32>
    %130 = arith.addf %127, %129 : vector<8x16xf32>
    %cst_83 = arith.constant 0.000000e+00 : f32
    %131 = vector.broadcast %cst_83 : f32 to vector<8x16xf32>
    %132 = arith.maximumf %130, %131 : vector<8x16xf32>
    %133 = arith.addf %132, %70 : vector<8x16xf32>
    %c208 = arith.constant 208 : index
    %c0_84 = arith.constant 0 : index
    %134 = vector.load %arg3[%c208, %c0_84] : memref<568x32xf32, #tpu.memory_space<vmem>>, vector<16x32xf32>
    %cst_85 = arith.constant dense<0.000000e+00> : vector<8x32xf32>
    %135 = tpu.matmul %133, %134, %cst_85 {dimension_numbers = #tpu.dot_dimension_numbers<[1], [0], [0], [1], [0, 0, 1, 1], [], []>} : vector<8x16xf32>, vector<16x32xf32>, vector<8x32xf32> -> vector<8x32xf32>
    %c0_86 = arith.constant 0 : index
    %c0_87 = arith.constant 0 : index
    %136 = vector.load %arg5[%c0_86, %c0_87] : memref<24x32xf32, #tpu.memory_space<vmem>>, vector<8x32xf32>
    tpu.vector_store %arg5[%c0_86, %c0_87], %135 {strides = array<i32>} : memref<24x32xf32, #tpu.memory_space<vmem>>, vector<8x32xf32>,
    %c224 = arith.constant 224 : index
    %c0_88 = arith.constant 0 : index
    %137 = vector.load %arg3[%c224, %c0_88] : memref<568x32xf32, #tpu.memory_space<vmem>>, vector<16x32xf32>
    %cst_89 = arith.constant dense<0.000000e+00> : vector<8x32xf32>
    %138 = tpu.matmul %133, %137, %cst_89 {dimension_numbers = #tpu.dot_dimension_numbers<[1], [0], [0], [1], [0, 0, 1, 1], [], []>} : vector<8x16xf32>, vector<16x32xf32>, vector<8x32xf32> -> vector<8x32xf32>
    %c8_90 = arith.constant 8 : index
    %c0_91 = arith.constant 0 : index
    %139 = vector.load %arg5[%c8_90, %c0_91] : memref<24x32xf32, #tpu.memory_space<vmem>>, vector<8x32xf32>
    tpu.vector_store %arg5[%c8_90, %c0_91], %138 {strides = array<i32>} : memref<24x32xf32, #tpu.memory_space<vmem>>, vector<8x32xf32>,
    %c240 = arith.constant 240 : index
    %c0_92 = arith.constant 0 : index
    %140 = vector.load %arg3[%c240, %c0_92] : memref<568x32xf32, #tpu.memory_space<vmem>>, vector<8x32xf32>
    %c16_93 = arith.constant 16 : index
    %c0_94 = arith.constant 0 : index
    %141 = vector.load %arg5[%c16_93, %c0_94] : memref<24x32xf32, #tpu.memory_space<vmem>>, vector<8x32xf32>
    tpu.vector_store %arg5[%c16_93, %c0_94], %140 {strides = array<i32>} : memref<24x32xf32, #tpu.memory_space<vmem>>, vector<8x32xf32>,
    %c0_95 = arith.constant 0 : index
    %c0_96 = arith.constant 0 : index
    %142 = vector.load %arg5[%c0_95, %c0_96] : memref<24x32xf32, #tpu.memory_space<vmem>>, vector<24x32xf32>
    %143 = arith.truncf %142 : vector<24x32xf32> to vector<24x32xbf16>
    %cst_97 = arith.constant dense<0.000000e+00> : vector<16x32xf32>
    %144 = tpu.matmul %6, %143, %cst_97 {dimension_numbers = #tpu.dot_dimension_numbers<[1], [0], [0], [1], [0, 0, 1, 1], [], []>} : vector<16x24xbf16>, vector<24x32xbf16>, vector<16x32xf32> -> vector<16x32xf32>
    %145 = vector.extract_strided_slice %144 {offsets = [0, 16], sizes = [16, 16], strides = [1, 1]} : vector<16x32xf32> to vector<16x16xf32>
    %146 = vector.extract_strided_slice %144 {offsets = [0, 0], sizes = [16, 16], strides = [1, 1]} : vector<16x32xf32> to vector<16x16xf32>
    %c248 = arith.constant 248 : index
    %c0_98 = arith.constant 0 : index
    %147 = vector.load %arg3[%c248, %c0_98] : memref<568x32xf32, #tpu.memory_space<vmem>>, vector<1x16xf32>
    %148 = vector.broadcast %147 : vector<1x16xf32> to vector<16x16xf32>
    %149 = arith.addf %146, %148 : vector<16x16xf32>
    %cst_99 = arith.constant 0.000000e+00 : f32
    %150 = vector.broadcast %cst_99 : f32 to vector<16x16xf32>
    %151 = arith.maximumf %149, %150 : vector<16x16xf32>
    %c256 = arith.constant 256 : index
    %c0_100 = arith.constant 0 : index
    %152 = vector.load %arg3[%c256, %c0_100] : memref<568x32xf32, #tpu.memory_space<vmem>>, vector<16x16xf32>
    %cst_101 = arith.constant dense<0.000000e+00> : vector<16x16xf32>
    %153 = tpu.matmul %151, %152, %cst_101 {dimension_numbers = #tpu.dot_dimension_numbers<[1], [0], [0], [1], [0, 0, 1, 1], [], []>} : vector<16x16xf32>, vector<16x16xf32>, vector<16x16xf32> -> vector<16x16xf32>
    %c272 = arith.constant 272 : index
    %c0_102 = arith.constant 0 : index
    %154 = vector.load %arg3[%c272, %c0_102] : memref<568x32xf32, #tpu.memory_space<vmem>>, vector<1x16xf32>
    %155 = vector.broadcast %154 : vector<1x16xf32> to vector<16x16xf32>
    %156 = arith.addf %153, %155 : vector<16x16xf32>
    %cst_103 = arith.constant 0.000000e+00 : f32
    %157 = vector.broadcast %cst_103 : f32 to vector<16x16xf32>
    %158 = arith.maximumf %156, %157 : vector<16x16xf32>
    %c280 = arith.constant 280 : index
    %c0_104 = arith.constant 0 : index
    %159 = vector.load %arg3[%c280, %c0_104] : memref<568x32xf32, #tpu.memory_space<vmem>>, vector<16x16xf32>
    %cst_105 = arith.constant dense<0.000000e+00> : vector<16x16xf32>
    %160 = tpu.matmul %158, %159, %cst_105 {dimension_numbers = #tpu.dot_dimension_numbers<[1], [0], [0], [1], [0, 0, 1, 1], [], []>} : vector<16x16xf32>, vector<16x16xf32>, vector<16x16xf32> -> vector<16x16xf32>
    %c296 = arith.constant 296 : index
    %c0_106 = arith.constant 0 : index
    %161 = vector.load %arg3[%c296, %c0_106] : memref<568x32xf32, #tpu.memory_space<vmem>>, vector<1x16xf32>
    %162 = vector.broadcast %161 : vector<1x16xf32> to vector<16x16xf32>
    %163 = arith.addf %160, %162 : vector<16x16xf32>
    %cst_107 = arith.constant 0.000000e+00 : f32
    %164 = vector.broadcast %cst_107 : f32 to vector<16x16xf32>
    %165 = arith.maximumf %163, %164 : vector<16x16xf32>
    %166 = arith.negf %165 : vector<16x16xf32>
    %167 = math.exp %166 : vector<16x16xf32>
    %cst_108 = arith.constant 1.000000e+00 : f32
    %168 = vector.broadcast %cst_108 : f32 to vector<16x16xf32>
    %169 = arith.addf %168, %167 : vector<16x16xf32>
    %170 = arith.divf %168, %169 : vector<16x16xf32>
    %171 = arith.mulf %145, %170 : vector<16x16xf32>
    %172 = arith.truncf %171 : vector<16x16xf32> to vector<16x16xbf16>
    %cst_109 = arith.constant dense<0.000000e+00> : vector<8x16xf32>
    %173 = tpu.matmul %7, %172, %cst_109 {dimension_numbers = #tpu.dot_dimension_numbers<[1], [0], [0], [1], [0, 0, 1, 1], [], []>} : vector<8x16xbf16>, vector<16x16xbf16>, vector<8x16xf32> -> vector<8x16xf32>
    %174 = tpu.concatenate %133, %173 in 1 : vector<8x16xf32>, vector<8x16xf32> -> vector<8x32xf32>
    %c480 = arith.constant 480 : index
    %c0_110 = arith.constant 0 : index
    %175 = vector.load %arg3[%c480, %c0_110] : memref<568x32xf32, #tpu.memory_space<vmem>>, vector<32x16xf32>
    %cst_111 = arith.constant dense<0.000000e+00> : vector<8x16xf32>
    %176 = tpu.matmul %174, %175, %cst_111 {dimension_numbers = #tpu.dot_dimension_numbers<[1], [0], [0], [1], [0, 0, 1, 1], [], []>} : vector<8x32xf32>, vector<32x16xf32>, vector<8x16xf32> -> vector<8x16xf32>
    %c512 = arith.constant 512 : index
    %c0_112 = arith.constant 0 : index
    %177 = vector.load %arg3[%c512, %c0_112] : memref<568x32xf32, #tpu.memory_space<vmem>>, vector<1x16xf32>
    %178 = vector.broadcast %177 : vector<1x16xf32> to vector<8x16xf32>
    %179 = arith.addf %176, %178 : vector<8x16xf32>
    %cst_113 = arith.constant 0.000000e+00 : f32
    %180 = vector.broadcast %cst_113 : f32 to vector<8x16xf32>
    %181 = arith.maximumf %179, %180 : vector<8x16xf32>
    %c520 = arith.constant 520 : index
    %c0_114 = arith.constant 0 : index
    %182 = vector.load %arg3[%c520, %c0_114] : memref<568x32xf32, #tpu.memory_space<vmem>>, vector<16x16xf32>
    %cst_115 = arith.constant dense<0.000000e+00> : vector<8x16xf32>
    %183 = tpu.matmul %181, %182, %cst_115 {dimension_numbers = #tpu.dot_dimension_numbers<[1], [0], [0], [1], [0, 0, 1, 1], [], []>} : vector<8x16xf32>, vector<16x16xf32>, vector<8x16xf32> -> vector<8x16xf32>
    %c536 = arith.constant 536 : index
    %c0_116 = arith.constant 0 : index
    %184 = vector.load %arg3[%c536, %c0_116] : memref<568x32xf32, #tpu.memory_space<vmem>>, vector<1x16xf32>
    %185 = vector.broadcast %184 : vector<1x16xf32> to vector<8x16xf32>
    %186 = arith.addf %183, %185 : vector<8x16xf32>
    %cst_117 = arith.constant 0.000000e+00 : f32
    %187 = vector.broadcast %cst_117 : f32 to vector<8x16xf32>
    %188 = arith.maximumf %186, %187 : vector<8x16xf32>
    %c544 = arith.constant 544 : index
    %c0_118 = arith.constant 0 : index
    %189 = vector.load %arg3[%c544, %c0_118] : memref<568x32xf32, #tpu.memory_space<vmem>>, vector<16x16xf32>
    %cst_119 = arith.constant dense<0.000000e+00> : vector<8x16xf32>
    %190 = tpu.matmul %188, %189, %cst_119 {dimension_numbers = #tpu.dot_dimension_numbers<[1], [0], [0], [1], [0, 0, 1, 1], [], []>} : vector<8x16xf32>, vector<16x16xf32>, vector<8x16xf32> -> vector<8x16xf32>
    %c560 = arith.constant 560 : index
    %c0_120 = arith.constant 0 : index
    %191 = vector.load %arg3[%c560, %c0_120] : memref<568x32xf32, #tpu.memory_space<vmem>>, vector<1x16xf32>
    %192 = vector.broadcast %191 : vector<1x16xf32> to vector<8x16xf32>
    %193 = arith.addf %190, %192 : vector<8x16xf32>
    %194 = arith.negf %193 : vector<8x16xf32>
    %195 = math.exp %194 : vector<8x16xf32>
    %cst_121 = arith.constant 1.000000e+00 : f32
    %196 = vector.broadcast %cst_121 : f32 to vector<8x16xf32>
    %197 = arith.addf %196, %195 : vector<8x16xf32>
    %198 = arith.divf %196, %197 : vector<8x16xf32>
    %c0_122 = arith.constant 0 : index
    %c0_123 = arith.constant 0 : index
    %199 = vector.load %arg4[%c0_122, %c0_123] : memref<8x16xf32, #tpu.memory_space<vmem>>, vector<8x16xf32>
    tpu.vector_store %arg4[%c0_122, %c0_123], %198 {strides = array<i32>} : memref<8x16xf32, #tpu.memory_space<vmem>>, vector<8x16xf32>,
    return
  }
}

</mosaic_0001>

<llo_original>
// kernel: tpu_custom_call.1
$region0: #{tpu_custom_call.1}
  #allocation0 [shape = 'u32[]', space=smem, size = 0x4, offset = 0x4, fixed_abs, tag = 'smem constant byte address 0x4 - core index']
  #allocation1 [shape = 'u32[144,128]{1,0:T(1,128)}', space=vmem, size = 0x12000, scoped, tag = 'internal scratch']
  #allocation2 [shape = 'f32[24,32]{1,0:T(8,128)}', space=vmem, size = 0x3000, scoped, tag = 'scratch operand']
  %s0 = inlined_call_operand.vmem [shape: f32[8,8], index: 0, kind: input, shape index: {}]
  %s1 = inlined_call_operand.vmem [shape: bf16[16,24], index: 1, kind: input, shape index: {}]
  %s2 = inlined_call_operand.vmem [shape: bf16[8,16], index: 2, kind: input, shape index: {}]
  %s3 = inlined_call_operand.vmem [shape: f32[568,32], index: 3, kind: input, shape index: {}]
  %s4 = inlined_call_operand.hbm [shape: f32[8,16], index: 4, kind: output, shape index: {}]
  %s5 = sld [smem:[#allocation0]]
  $region26: #{tpu_custom_call.1} parent=0
    _
  %s7 = ssub.s32 1, %s5
  %s8 = scalar_select 0, %s7, %s5
  $region1: #{tpu_custom_call.1} parent=0
    #allocation3 [shape = 'u8[4096]{0}', space=vmem, size = 0x1000, scoped, tag = 'output window, operand 0, single buffered']
    #allocation4 [shape = 's32[1]{0}', space=sflag, size = 0x4, scoped, tag = 'scoped memory for tpu_custom_call.1']
    %9 = vsyncpa [#allocation4], 0
    // Predicated region
    $region2: #{tpu_custom_call.1} parent=1 // pred_check
      _
    $region3: #{tpu_custom_call.1} parent=1 // pred_check_branch
      %11 = sbr.rel (0) target = $region5
    $region4: #{tpu_custom_call.1} parent=1 // pred_region
      _
    $region5: #{tpu_custom_call.1} parent=1 // pred_fallthru
      _
    // Predicated region
    $region6: #{tpu_custom_call.1} parent=1 // pred_check
      _
    $region7: #{tpu_custom_call.1} parent=1 // pred_check_branch
      %13 = sbr.rel (0) target = $region9
    $region8: #{tpu_custom_call.1} parent=1 // pred_region
      _
    $region9: #{tpu_custom_call.1} parent=1 // pred_fallthru
      _
    // Predicated region
    $region10: #{tpu_custom_call.1} parent=1 // pred_check
      _
    $region11: #{tpu_custom_call.1} parent=1 // pred_check_branch
      %15 = sbr.rel (0) target = $region13
    $region12: #{tpu_custom_call.1} parent=1 // pred_region
      _
    $region13: #{tpu_custom_call.1} parent=1 // pred_fallthru
      _
    // Predicated region
    $region14: #{tpu_custom_call.1} parent=1 // pred_check
      _
    $region15: #{tpu_custom_call.1} parent=1 // pred_check_branch
      %17 = sbr.rel (0) target = $region17
    $region16: #{tpu_custom_call.1} parent=1 // pred_region
      _
    $region17: #{tpu_custom_call.1} parent=1 // pred_fallthru
      _
    %v19 = vld [vmem:[%s0] sm:$0xff]
    %v20 = vld [vmem:[%s3] sm:$0xff]
    %v21 = vld [vmem:[%s3 + $0x8] sm:$0x1]
    %v22 = vlaneseq
    %v23 = vshrl.u32 %v22, 7
    %v24 = vsub.s32 0, %v23
    %v25 = vrot.slane %v21, %v24
    %vm26 = vcmask 64512
    %v28 = vsel %vm26, %v19, 0
    %30 = vmatprep.subr.mxu0 0.0
    %31 = vmatpush1.msra.mxu0 %v20
    %32 = vmatprep.subr.mxu0 0.0
    %33 = vmatpush1.msra.mxu0 0.0
    %34 = vmatprep.subr.mxu0 0.0
    %35 = vmatpush1.msra.mxu0 0.0
    %36 = vmatprep.subr.mxu0 0.0
    %37 = vmatpush1.msra.mxu0 0.0
    %38 = vmatprep.subr.mxu0 0.0
    %39 = vmatpush1.msra.mxu0 0.0
    %40 = vmatprep.subr.mxu0 0.0
    %41 = vmatpush1.msra.mxu0 0.0
    %42 = vmatprep.subr.mxu0 0.0
    %43 = vmatpush1.msra.mxu0 0.0
    %44 = vmatprep.subr.mxu0 0.0
    %45 = vmatpush1.msra.mxu0 0.0
    %46 = vmatprep.subr.mxu0 0.0
    %47 = vmatpush1.msra.mxu0 0.0
    %48 = vmatprep.subr.mxu0 0.0
    %49 = vmatpush1.msra.mxu0 0.0
    %50 = vmatprep.subr.mxu0 0.0
    %51 = vmatpush1.msra.mxu0 0.0
    %52 = vmatprep.subr.mxu0 0.0
    %53 = vmatpush1.msra.mxu0 0.0
    %54 = vmatprep.subr.mxu0 0.0
    %55 = vmatpush1.msra.mxu0 0.0
    %56 = vmatprep.subr.mxu0 0.0
    %57 = vmatpush1.msra.mxu0 0.0
    %58 = vmatprep.subr.mxu0 0.0
    %59 = vmatpush1.msra.mxu0 0.0
    %60 = vmatprep.subr.mxu0 0.0
    %61 = vmatpush1.msra.mxu0 0.0
    %62 = vmatprep.subr.mxu0 0.0
    %63 = vmatpush1.msra.mxu0 0.0
    %64 = vmatprep.subr.mxu0 0.0
    %65 = vmatpush1.msra.mxu0 0.0
    %66 = vmatprep.subr.mxu0 0.0
    %67 = vmatpush1.msra.mxu0 0.0
    %68 = vmatprep.subr.mxu0 0.0
    %69 = vmatpush1.msra.mxu0 0.0
    %70 = vmatprep.subr.mxu0 0.0
    %71 = vmatpush1.msra.mxu0 0.0
    %72 = vmatprep.subr.mxu0 0.0
    %73 = vmatpush1.msra.mxu0 0.0
    %74 = vmatprep.subr.mxu0 0.0
    %75 = vmatpush1.msra.mxu0 0.0
    %76 = vmatprep.subr.mxu0 0.0
    %77 = vmatpush1.msra.mxu0 0.0
    %78 = vmatprep.subr.mxu0 0.0
    %79 = vmatpush1.msra.mxu0 0.0
    %80 = vmatprep.subr.mxu0 0.0
    %81 = vmatpush1.msra.mxu0 0.0
    %82 = vmatprep.subr.mxu0 0.0
    %83 = vmatpush1.msra.mxu0 0.0
    %84 = vmatprep.subr.mxu0 0.0
    %85 = vmatpush1.msra.mxu0 0.0
    %86 = vmatprep.subr.mxu0 0.0
    %87 = vmatpush1.msra.mxu0 0.0
    %88 = vmatprep.subr.mxu0 0.0
    %89 = vmatpush1.msra.mxu0 0.0
    %90 = vmatprep.subr.mxu0 0.0
    %91 = vmatpush1.msra.mxu0 0.0
    %92 = vmatprep.subr.mxu0 0.0
    %93 = vmatpush1.msra.mxu0 0.0
    %94 = vmatprep.mubr.f32.mxu0 0.0
    %95 = vmatmul.mubr.f32.gmra.mrb[0].mxu0 %v28
    %v96 = vpop.f32.mrb[0].mxu0
    %v97 = vadd.f32 %v25, %v96
    %v98 = vpop.f32.mrb[0].mxu0
    %99 = vdwg.mxu0
    %v100 = vld [vmem:[%s1] sm:$0xf]
    %v101 = vld [vmem:[%s1 + $0x4] sm:$0xf]
    %v102 = vld [vmem:[%s2] sm:$0xf]
    %v103 = vld [vmem:[%s3 + $0x10] sm:$0xff]
    %v104 = vld [vmem:[%s3 + $0x18] sm:$0xff]
    %vm105 = vcmask 130048
    %v107 = vsel %vm105, %v97, 0
    %109 = vmatprep.subr.mxu0 0.0
    %110 = vmatpush1.msra.mxu0 %v103
    %111 = vmatprep.subr.mxu0 0.0
    %112 = vmatpush1.msra.mxu0 %v104
    %113 = vmatprep.subr.mxu0 0.0
    %114 = vmatpush1.msra.mxu0 0.0
    %115 = vmatprep.subr.mxu0 0.0
    %116 = vmatpush1.msra.mxu0 0.0
    %117 = vmatprep.subr.mxu0 0.0
    %118 = vmatpush1.msra.mxu0 0.0
    %119 = vmatprep.subr.mxu0 0.0
    %120 = vmatpush1.msra.mxu0 0.0
    %121 = vmatprep.subr.mxu0 0.0
    %122 = vmatpush1.msra.mxu0 0.0
    %123 = vmatprep.subr.mxu0 0.0
    %124 = vmatpush1.msra.mxu0 0.0
    %125 = vmatprep.subr.mxu0 0.0
    %126 = vmatpush1.msra.mxu0 0.0
    %127 = vmatprep.subr.mxu0 0.0
    %128 = vmatpush1.msra.mxu0 0.0
    %129 = vmatprep.subr.mxu0 0.0
    %130 = vmatpush1.msra.mxu0 0.0
    %131 = vmatprep.subr.mxu0 0.0
    %132 = vmatpush1.msra.mxu0 0.0
    %133 = vmatprep.subr.mxu0 0.0
    %134 = vmatpush1.msra.mxu0 0.0
    %135 = vmatprep.subr.mxu0 0.0
    %136 = vmatpush1.msra.mxu0 0.0
    %137 = vmatprep.subr.mxu0 0.0
    %138 = vmatpush1.msra.mxu0 0.0
    %139 = vmatprep.subr.mxu0 0.0
    %140 = vmatpush1.msra.mxu0 0.0
    %141 = vmatprep.subr.mxu0 0.0
    %142 = vmatpush1.msra.mxu0 0.0
    %143 = vmatprep.subr.mxu0 0.0
    %144 = vmatpush1.msra.mxu0 0.0
    %145 = vmatprep.subr.mxu0 0.0
    %146 = vmatpush1.msra.mxu0 0.0
    %147 = vmatprep.subr.mxu0 0.0
    %148 = vmatpush1.msra.mxu0 0.0
    %149 = vmatprep.subr.mxu0 0.0
    %150 = vmatpush1.msra.mxu0 0.0
    %151 = vmatprep.subr.mxu0 0.0
    %152 = vmatpush1.msra.mxu0 0.0
    %153 = vmatprep.subr.mxu0 0.0
    %154 = vmatpush1.msra.mxu0 0.0
    %155 = vmatprep.subr.mxu0 0.0
    %156 = vmatpush1.msra.mxu0 0.0
    %157 = vmatprep.subr.mxu0 0.0
    %158 = vmatpush1.msra.mxu0 0.0
    %159 = vmatprep.subr.mxu0 0.0
    %160 = vmatpush1.msra.mxu0 0.0
    %161 = vmatprep.subr.mxu0 0.0
    %162 = vmatpush1.msra.mxu0 0.0
    %163 = vmatprep.subr.mxu0 0.0
    %164 = vmatpush1.msra.mxu0 0.0
    %165 = vmatprep.subr.mxu0 0.0
    %166 = vmatpush1.msra.mxu0 0.0
    %167 = vmatprep.subr.mxu0 0.0
    %168 = vmatpush1.msra.mxu0 0.0
    %169 = vmatprep.subr.mxu0 0.0
    %170 = vmatpush1.msra.mxu0 0.0
    %171 = vmatprep.subr.mxu0 0.0
    %172 = vmatpush1.msra.mxu0 0.0
    %173 = vmatprep.mubr.f32.mxu0 0.0
    %174 = vmatmul.mubr.f32.gmra.mrb[0].mxu0 %v107
    %v175 = vpop.f32.mrb[0].mxu0
    %v176 = vadd.f32 0.0, %v175
    %v177 = vpop.f32.mrb[0].mxu0
    %178 = vdwg.mxu0
    %vm179 = vcmask 261120
    %180 = vst.msk [vmem:[#allocation2] sm:$0xff] %vm179, %v176
    %v181 = vld [vmem:[%s3 + $0x20] sm:$0xff]
    %v182 = vld [vmem:[%s3 + $0x28] sm:$0xff]
    %183 = vmatprep.subr.mxu0 0.0
    %184 = vmatpush1.msra.mxu0 %v181
    %185 = vmatprep.subr.mxu0 0.0
    %186 = vmatpush1.msra.mxu0 %v182
    %187 = vmatprep.subr.mxu0 0.0
    %188 = vmatpush1.msra.mxu0 0.0
    %189 = vmatprep.subr.mxu0 0.0
    %190 = vmatpush1.msra.mxu0 0.0
    %191 = vmatprep.subr.mxu0 0.0
    %192 = vmatpush1.msra.mxu0 0.0
    %193 = vmatprep.subr.mxu0 0.0
    %194 = vmatpush1.msra.mxu0 0.0
    %195 = vmatprep.subr.mxu0 0.0
    %196 = vmatpush1.msra.mxu0 0.0
    %197 = vmatprep.subr.mxu0 0.0
    %198 = vmatpush1.msra.mxu0 0.0
    %199 = vmatprep.subr.mxu0 0.0
    %200 = vmatpush1.msra.mxu0 0.0
    %201 = vmatprep.subr.mxu0 0.0
    %202 = vmatpush1.msra.mxu0 0.0
    %203 = vmatprep.subr.mxu0 0.0
    %204 = vmatpush1.msra.mxu0 0.0
    %205 = vmatprep.subr.mxu0 0.0
    %206 = vmatpush1.msra.mxu0 0.0
    %207 = vmatprep.subr.mxu0 0.0
    %208 = vmatpush1.msra.mxu0 0.0
    %209 = vmatprep.subr.mxu0 0.0
    %210 = vmatpush1.msra.mxu0 0.0
    %211 = vmatprep.subr.mxu0 0.0
    %212 = vmatpush1.msra.mxu0 0.0
    %213 = vmatprep.subr.mxu0 0.0
    %214 = vmatpush1.msra.mxu0 0.0
    %215 = vmatprep.subr.mxu0 0.0
    %216 = vmatpush1.msra.mxu0 0.0
    %217 = vmatprep.subr.mxu0 0.0
    %218 = vmatpush1.msra.mxu0 0.0
    %219 = vmatprep.subr.mxu0 0.0
    %220 = vmatpush1.msra.mxu0 0.0
    %221 = vmatprep.subr.mxu0 0.0
    %222 = vmatpush1.msra.mxu0 0.0
    %223 = vmatprep.subr.mxu0 0.0
    %224 = vmatpush1.msra.mxu0 0.0
    %225 = vmatprep.subr.mxu0 0.0
    %226 = vmatpush1.msra.mxu0 0.0
    %227 = vmatprep.subr.mxu0 0.0
    %228 = vmatpush1.msra.mxu0 0.0
    %229 = vmatprep.subr.mxu0 0.0
    %230 = vmatpush1.msra.mxu0 0.0
    %231 = vmatprep.subr.mxu0 0.0
    %232 = vmatpush1.msra.mxu0 0.0
    %233 = vmatprep.subr.mxu0 0.0
    %234 = vmatpush1.msra.mxu0 0.0
    %235 = vmatprep.subr.mxu0 0.0
    %236 = vmatpush1.msra.mxu0 0.0
    %237 = vmatprep.subr.mxu0 0.0
    %238 = vmatpush1.msra.mxu0 0.0
    %239 = vmatprep.subr.mxu0 0.0
    %240 = vmatpush1.msra.mxu0 0.0
    %241 = vmatprep.subr.mxu0 0.0
    %242 = vmatpush1.msra.mxu0 0.0
    %243 = vmatprep.subr.mxu0 0.0
    %244 = vmatpush1.msra.mxu0 0.0
    %245 = vmatprep.subr.mxu0 0.0
    %246 = vmatpush1.msra.mxu0 0.0
    %247 = vmatprep.mubr.f32.mxu0 0.0
    %248 = vmatmul.mubr.f32.gmra.mrb[0].mxu0 %v107
    %v249 = vpop.f32.mrb[0].mxu0
    %v250 = vadd.f32 0.0, %v249
    %v251 = vpop.f32.mrb[0].mxu0
    %252 = vdwg.mxu0
    %253 = vst.msk [vmem:[#allocation2 + $0x8] sm:$0xff] %vm179, %v250
    %v254 = vld [vmem:[%s3 + $0x30] sm:$0xff]
    %255 = vst.msk [vmem:[#allocation2 + $0x10] sm:$0xff] %vm179, %v254
    %v256 = vld [vmem:[#allocation2] sm:$0xff]
    %v257 = vld [vmem:[#allocation2 + $0x8] sm:$0xff]
    %v258 = vld [vmem:[#allocation2 + $0x10] sm:$0xff]
    %v259 = vpack.c.bf16 %v257, %v256
    %v260 = vpack.c.bf16 %v258, %v258
    %v263 = vunpack.c.l.b16 %v100
    %v264 = vunpack.c.l.b16 %v101
    %v265 = vpack.c.b16 %v264, %v263
    %vm266 = vcmask 195584
    %v268 = vsel %vm266, %v265, 0
    %vm270 = vcmask 1043456
    %v272 = vsel %vm270, %v260, 0
    %274 = vmatprep.subr.bf16.mxu0 0
    %275 = vmatpush1.bf16.msra.mxu0 %v259
    %276 = vmatprep.subr.bf16.mxu0 0
    %277 = vmatpush1.bf16.msra.mxu0 %v272
    %278 = vmatprep.subr.bf16.mxu0 0
    %279 = vmatpush1.bf16.msra.mxu0 0
    %280 = vmatprep.subr.bf16.mxu0 0
    %281 = vmatpush1.bf16.msra.mxu0 0
    %282 = vmatprep.subr.bf16.mxu0 0
    %283 = vmatpush1.bf16.msra.mxu0 0
    %284 = vmatprep.subr.bf16.mxu0 0
    %285 = vmatpush1.bf16.msra.mxu0 0
    %286 = vmatprep.subr.bf16.mxu0 0
    %287 = vmatpush1.bf16.msra.mxu0 0
    %288 = vmatprep.subr.bf16.mxu0 0
    %289 = vmatpush1.bf16.msra.mxu0 0
    %290 = vmatprep.subr.bf16.mxu0 0
    %291 = vmatpush1.bf16.msra.mxu0 0
    %292 = vmatprep.subr.bf16.mxu0 0
    %293 = vmatpush1.bf16.msra.mxu0 0
    %294 = vmatprep.subr.bf16.mxu0 0
    %295 = vmatpush1.bf16.msra.mxu0 0
    %296 = vmatprep.subr.bf16.mxu0 0
    %297 = vmatpush1.bf16.msra.mxu0 0
    %298 = vmatprep.subr.bf16.mxu0 0
    %299 = vmatpush1.bf16.msra.mxu0 0
    %300 = vmatprep.subr.bf16.mxu0 0
    %301 = vmatpush1.bf16.msra.mxu0 0
    %302 = vmatprep.subr.bf16.mxu0 0
    %303 = vmatpush1.bf16.msra.mxu0 0
    %304 = vmatprep.subr.bf16.mxu0 0
    %305 = vmatpush1.bf16.msra.mxu0 0
    %306 = vmatprep.mubr.bf16.mxu0 0
    %307 = vmatmul.mubr.bf16.gmra.mrb[0].mxu0 %v268
    %v308 = vpop.f32.mrb[0].mxu0
    %v309 = vadd.f32 0.0, %v308
    %v310 = vpop.f32.mrb[0].mxu0
    %v311 = vpop.f32.mrb[0].mxu0
    %v312 = vadd.f32 0.0, %v311
    %v313 = vpop.f32.mrb[0].mxu0
    %314 = vdwg.mxu0
    %v315 = vld [vmem:[%s3 + $0x38] sm:$0x1]
    %v316 = vlaneseq
    %v317 = vshrl.u32 %v316, 7
    %v318 = vsub.s32 0, %v317
    %v319 = vrot.slane %v315, %v318
    %v320 = vadd.f32 %v309, %v319
    %v321 = vadd.f32 %v312, %v319
    %v322 = vmax.f32 %v320, 0.0
    %v323 = vmax.f32 %v321, 0.0
    %v324 = vld [vmem:[%s3 + $0x40] sm:$0xff]
    %v325 = vld [vmem:[%s3 + $0x48] sm:$0xff]
    %v326 = vld [vmem:[%s3 + $0x50] sm:$0x1]
    %v327 = vlaneseq
    %v328 = vshrl.u32 %v327, 7
    %v329 = vsub.s32 0, %v328
    %v330 = vrot.slane %v326, %v329
    %v332 = vsel %vm105, %v322, 0
    %v335 = vsel %vm105, %v323, 0
    %337 = vmatprep.subr.mxu0 0.0
    %338 = vmatpush1.msra.mxu0 %v324
    %339 = vmatprep.subr.mxu0 0.0
    %340 = vmatpush1.msra.mxu0 %v325
    %341 = vmatprep.subr.mxu0 0.0
    %342 = vmatpush1.msra.mxu0 0.0
    %343 = vmatprep.subr.mxu0 0.0
    %344 = vmatpush1.msra.mxu0 0.0
    %345 = vmatprep.subr.mxu0 0.0
    %346 = vmatpush1.msra.mxu0 0.0
    %347 = vmatprep.subr.mxu0 0.0
    %348 = vmatpush1.msra.mxu0 0.0
    %349 = vmatprep.subr.mxu0 0.0
    %350 = vmatpush1.msra.mxu0 0.0
    %351 = vmatprep.subr.mxu0 0.0
    %352 = vmatpush1.msra.mxu0 0.0
    %353 = vmatprep.subr.mxu0 0.0
    %354 = vmatpush1.msra.mxu0 0.0
    %355 = vmatprep.subr.mxu0 0.0
    %356 = vmatpush1.msra.mxu0 0.0
    %357 = vmatprep.subr.mxu0 0.0
    %358 = vmatpush1.msra.mxu0 0.0
    %359 = vmatprep.subr.mxu0 0.0
    %360 = vmatpush1.msra.mxu0 0.0
    %361 = vmatprep.subr.mxu0 0.0
    %362 = vmatpush1.msra.mxu0 0.0
    %363 = vmatprep.subr.mxu0 0.0
    %364 = vmatpush1.msra.mxu0 0.0
    %365 = vmatprep.subr.mxu0 0.0
    %366 = vmatpush1.msra.mxu0 0.0
    %367 = vmatprep.subr.mxu0 0.0
    %368 = vmatpush1.msra.mxu0 0.0
    %369 = vmatprep.subr.mxu0 0.0
    %370 = vmatpush1.msra.mxu0 0.0
    %371 = vmatprep.subr.mxu0 0.0
    %372 = vmatpush1.msra.mxu0 0.0
    %373 = vmatprep.subr.mxu0 0.0
    %374 = vmatpush1.msra.mxu0 0.0
    %375 = vmatprep.subr.mxu0 0.0
    %376 = vmatpush1.msra.mxu0 0.0
    %377 = vmatprep.subr.mxu0 0.0
    %378 = vmatpush1.msra.mxu0 0.0
    %379 = vmatprep.subr.mxu0 0.0
    %380 = vmatpush1.msra.mxu0 0.0
    %381 = vmatprep.subr.mxu0 0.0
    %382 = vmatpush1.msra.mxu0 0.0
    %383 = vmatprep.subr.mxu0 0.0
    %384 = vmatpush1.msra.mxu0 0.0
    %385 = vmatprep.subr.mxu0 0.0
    %386 = vmatpush1.msra.mxu0 0.0
    %387 = vmatprep.subr.mxu0 0.0
    %388 = vmatpush1.msra.mxu0 0.0
    %389 = vmatprep.subr.mxu0 0.0
    %390 = vmatpush1.msra.mxu0 0.0
    %391 = vmatprep.subr.mxu0 0.0
    %392 = vmatpush1.msra.mxu0 0.0
    %393 = vmatprep.subr.mxu0 0.0
    %394 = vmatpush1.msra.mxu0 0.0
    %395 = vmatprep.subr.mxu0 0.0
    %396 = vmatpush1.msra.mxu0 0.0
    %397 = vmatprep.subr.mxu0 0.0
    %398 = vmatpush1.msra.mxu0 0.0
    %399 = vmatprep.subr.mxu0 0.0
    %400 = vmatpush1.msra.mxu0 0.0
    %401 = vmatprep.mubr.f32.mxu0 0.0
    %402 = vmatmul.mubr.f32.gmra.mrb[0].mxu0 %v332
    %v403 = vpop.f32.mrb[0].mxu0
    %v404 = vadd.f32 %v330, %v403
    %v405 = vpop.f32.mrb[0].mxu0
    %406 = vmatprep.mubr.f32.mxu0 0.0
    %407 = vmatmul.mubr.f32.gmra.mrb[0].mxu0 %v335
    %v408 = vpop.f32.mrb[0].mxu0
    %v409 = vadd.f32 %v330, %v408
    %v410 = vpop.f32.mrb[0].mxu0
    %411 = vdwg.mxu0
    %v412 = vmax.f32 %v404, 0.0
    %v413 = vmax.f32 %v409, 0.0
    %v414 = vld [vmem:[%s3 + $0x58] sm:$0xff]
    %v415 = vld [vmem:[%s3 + $0x60] sm:$0xff]
    %v416 = vld [vmem:[%s3 + $0x68] sm:$0x1]
    %v417 = vlaneseq
    %v418 = vshrl.u32 %v417, 7
    %v419 = vsub.s32 0, %v418
    %v420 = vrot.slane %v416, %v419
    %v422 = vsel %vm105, %v412, 0
    %v425 = vsel %vm105, %v413, 0
    %427 = vmatprep.subr.mxu0 0.0
    %428 = vmatpush1.msra.mxu0 %v414
    %429 = vmatprep.subr.mxu0 0.0
    %430 = vmatpush1.msra.mxu0 %v415
    %431 = vmatprep.subr.mxu0 0.0
    %432 = vmatpush1.msra.mxu0 0.0
    %433 = vmatprep.subr.mxu0 0.0
    %434 = vmatpush1.msra.mxu0 0.0
    %435 = vmatprep.subr.mxu0 0.0
    %436 = vmatpush1.msra.mxu0 0.0
    %437 = vmatprep.subr.mxu0 0.0
    %438 = vmatpush1.msra.mxu0 0.0
    %439 = vmatprep.subr.mxu0 0.0
    %440 = vmatpush1.msra.mxu0 0.0
    %441 = vmatprep.subr.mxu0 0.0
    %442 = vmatpush1.msra.mxu0 0.0
    %443 = vmatprep.subr.mxu0 0.0
    %444 = vmatpush1.msra.mxu0 0.0
    %445 = vmatprep.subr.mxu0 0.0
    %446 = vmatpush1.msra.mxu0 0.0
    %447 = vmatprep.subr.mxu0 0.0
    %448 = vmatpush1.msra.mxu0 0.0
    %449 = vmatprep.subr.mxu0 0.0
    %450 = vmatpush1.msra.mxu0 0.0
    %451 = vmatprep.subr.mxu0 0.0
    %452 = vmatpush1.msra.mxu0 0.0
    %453 = vmatprep.subr.mxu0 0.0
    %454 = vmatpush1.msra.mxu0 0.0
    %455 = vmatprep.subr.mxu0 0.0
    %456 = vmatpush1.msra.mxu0 0.0
    %457 = vmatprep.subr.mxu0 0.0
    %458 = vmatpush1.msra.mxu0 0.0
    %459 = vmatprep.subr.mxu0 0.0
    %460 = vmatpush1.msra.mxu0 0.0
    %461 = vmatprep.subr.mxu0 0.0
    %462 = vmatpush1.msra.mxu0 0.0
    %463 = vmatprep.subr.mxu0 0.0
    %464 = vmatpush1.msra.mxu0 0.0
    %465 = vmatprep.subr.mxu0 0.0
    %466 = vmatpush1.msra.mxu0 0.0
    %467 = vmatprep.subr.mxu0 0.0
    %468 = vmatpush1.msra.mxu0 0.0
    %469 = vmatprep.subr.mxu0 0.0
    %470 = vmatpush1.msra.mxu0 0.0
    %471 = vmatprep.subr.mxu0 0.0
    %472 = vmatpush1.msra.mxu0 0.0
    %473 = vmatprep.subr.mxu0 0.0
    %474 = vmatpush1.msra.mxu0 0.0
    %475 = vmatprep.subr.mxu0 0.0
    %476 = vmatpush1.msra.mxu0 0.0
    %477 = vmatprep.subr.mxu0 0.0
    %478 = vmatpush1.msra.mxu0 0.0
    %479 = vmatprep.subr.mxu0 0.0
    %480 = vmatpush1.msra.mxu0 0.0
    %481 = vmatprep.subr.mxu0 0.0
    %482 = vmatpush1.msra.mxu0 0.0
    %483 = vmatprep.subr.mxu0 0.0
    %484 = vmatpush1.msra.mxu0 0.0
    %485 = vmatprep.subr.mxu0 0.0
    %486 = vmatpush1.msra.mxu0 0.0
    %487 = vmatprep.subr.mxu0 0.0
    %488 = vmatpush1.msra.mxu0 0.0
    %489 = vmatprep.subr.mxu0 0.0
    %490 = vmatpush1.msra.mxu0 0.0
    %491 = vmatprep.mubr.f32.mxu0 0.0
    %492 = vmatmul.mubr.f32.gmra.mrb[0].mxu0 %v422
    %v493 = vpop.f32.mrb[0].mxu0
    %v494 = vadd.f32 %v420, %v493
    %v495 = vpop.f32.mrb[0].mxu0
    %496 = vmatprep.mubr.f32.mxu0 0.0
    %497 = vmatmul.mubr.f32.gmra.mrb[0].mxu0 %v425
    %v498 = vpop.f32.mrb[0].mxu0
    %v499 = vadd.f32 %v420, %v498
    %v500 = vpop.f32.mrb[0].mxu0
    %501 = vdwg.mxu0
    %v502 = vmax.f32 %v494, 0.0
    %v503 = vmax.f32 %v499, 0.0
    %v504 = vxor.u32 %v502, 2147483648
    %v505 = vxor.u32 %v503, 2147483648
    %v506 = vmul.f32 %v504, 1.442695
    %v507 = vpow.pop %v506
    %v508 = vmul.f32 %v505, 1.442695
    %v509 = vpow.pop %v508
    %v510 = vadd.f32 %v507, 1.0
    %v511 = vadd.f32 %v509, 1.0
    %v512 = vrcp.pop %v510
    %v513 = vmul.f32 1.0, %v512
    %v514 = vrcp.pop %v511
    %v515 = vmul.f32 1.0, %v514
    %518 = vrot.lane.b32.xlu0 %v513, 16
    %v519 = vpop.permute.xlu0 %518
    %520 = vrot.lane.b32.xlu0 %v515, 16
    %v521 = vpop.permute.xlu0 %520
    %v524 = vmul.f32 %v309, %v519
    %v525 = vmul.f32 %v312, %v521
    %v526 = vpack.c.bf16 %v525, %v524
    %528 = vrot.lane.b32.xlu0 %v526, 112
    %v529 = vpop.permute.xlu0 %528
    %v532 = vsel %vm105, %v102, 0
    %534 = vmatprep.subr.bf16.mxu0 0
    %535 = vmatpush1.bf16.msra.mxu0 %v529
    %536 = vmatprep.subr.bf16.mxu0 0
    %537 = vmatpush1.bf16.msra.mxu0 0
    %538 = vmatprep.subr.bf16.mxu0 0
    %539 = vmatpush1.bf16.msra.mxu0 0
    %540 = vmatprep.subr.bf16.mxu0 0
    %541 = vmatpush1.bf16.msra.mxu0 0
    %542 = vmatprep.subr.bf16.mxu0 0
    %543 = vmatpush1.bf16.msra.mxu0 0
    %544 = vmatprep.subr.bf16.mxu0 0
    %545 = vmatpush1.bf16.msra.mxu0 0
    %546 = vmatprep.subr.bf16.mxu0 0
    %547 = vmatpush1.bf16.msra.mxu0 0
    %548 = vmatprep.subr.bf16.mxu0 0
    %549 = vmatpush1.bf16.msra.mxu0 0
    %550 = vmatprep.subr.bf16.mxu0 0
    %551 = vmatpush1.bf16.msra.mxu0 0
    %552 = vmatprep.subr.bf16.mxu0 0
    %553 = vmatpush1.bf16.msra.mxu0 0
    %554 = vmatprep.subr.bf16.mxu0 0
    %555 = vmatpush1.bf16.msra.mxu0 0
    %556 = vmatprep.subr.bf16.mxu0 0
    %557 = vmatpush1.bf16.msra.mxu0 0
    %558 = vmatprep.subr.bf16.mxu0 0
    %559 = vmatpush1.bf16.msra.mxu0 0
    %560 = vmatprep.subr.bf16.mxu0 0
    %561 = vmatpush1.bf16.msra.mxu0 0
    %562 = vmatprep.subr.bf16.mxu0 0
    %563 = vmatpush1.bf16.msra.mxu0 0
    %564 = vmatprep.subr.bf16.mxu0 0
    %565 = vmatpush1.bf16.msra.mxu0 0
    %566 = vmatprep.mubr.bf16.mxu0 0
    %567 = vmatmul.mubr.bf16.gmra.mrb[0].mxu0 %v532
    %v568 = vpop.f32.mrb[0].mxu0
    %v569 = vadd.f32 0.0, %v568
    %v570 = vpop.f32.mrb[0].mxu0
    %v571 = vpop.f32.mrb[0].mxu0
    %v572 = vpop.f32.mrb[0].mxu0
    %573 = vdwg.mxu0
    %575 = vrot.lane.b32.xlu0 %v569, 16
    %v576 = vpop.permute.xlu0 %575
    %v578 = vsel %vm105, %v97, %v576
    %v579 = vld [vmem:[%s3 + $0x130] sm:$0xff]
    %v580 = vld [vmem:[%s3 + $0x138] sm:$0xff]
    %v581 = vld [vmem:[%s3 + $0x140] sm:$0xff]
    %v582 = vld [vmem:[%s3 + $0x148] sm:$0xff]
    %v583 = vld [vmem:[%s3 + $0x150] sm:$0x1]
    %v584 = vlaneseq
    %v585 = vshrl.u32 %v584, 7
    %v586 = vsub.s32 0, %v585
    %v587 = vrot.slane %v583, %v586
    %v589 = vsel %vm179, %v578, 0
    %591 = vmatprep.subr.mxu0 0.0
    %592 = vmatpush1.msra.mxu0 %v579
    %593 = vmatprep.subr.mxu0 0.0
    %594 = vmatpush1.msra.mxu0 %v580
    %595 = vmatprep.subr.mxu0 0.0
    %596 = vmatpush1.msra.mxu0 %v581
    %597 = vmatprep.subr.mxu0 0.0
    %598 = vmatpush1.msra.mxu0 %v582
    %599 = vmatprep.subr.mxu0 0.0
    %600 = vmatpush1.msra.mxu0 0.0
    %601 = vmatprep.subr.mxu0 0.0
    %602 = vmatpush1.msra.mxu0 0.0
    %603 = vmatprep.subr.mxu0 0.0
    %604 = vmatpush1.msra.mxu0 0.0
    %605 = vmatprep.subr.mxu0 0.0
    %606 = vmatpush1.msra.mxu0 0.0
    %607 = vmatprep.subr.mxu0 0.0
    %608 = vmatpush1.msra.mxu0 0.0
    %609 = vmatprep.subr.mxu0 0.0
    %610 = vmatpush1.msra.mxu0 0.0
    %611 = vmatprep.subr.mxu0 0.0
    %612 = vmatpush1.msra.mxu0 0.0
    %613 = vmatprep.subr.mxu0 0.0
    %614 = vmatpush1.msra.mxu0 0.0
    %615 = vmatprep.subr.mxu0 0.0
    %616 = vmatpush1.msra.mxu0 0.0
    %617 = vmatprep.subr.mxu0 0.0
    %618 = vmatpush1.msra.mxu0 0.0
    %619 = vmatprep.subr.mxu0 0.0
    %620 = vmatpush1.msra.mxu0 0.0
    %621 = vmatprep.subr.mxu0 0.0
    %622 = vmatpush1.msra.mxu0 0.0
    %623 = vmatprep.subr.mxu0 0.0
    %624 = vmatpush1.msra.mxu0 0.0
    %625 = vmatprep.subr.mxu0 0.0
    %626 = vmatpush1.msra.mxu0 0.0
    %627 = vmatprep.subr.mxu0 0.0
    %628 = vmatpush1.msra.mxu0 0.0
    %629 = vmatprep.subr.mxu0 0.0
    %630 = vmatpush1.msra.mxu0 0.0
    %631 = vmatprep.subr.mxu0 0.0
    %632 = vmatpush1.msra.mxu0 0.0
    %633 = vmatprep.subr.mxu0 0.0
    %634 = vmatpush1.msra.mxu0 0.0
    %635 = vmatprep.subr.mxu0 0.0
    %636 = vmatpush1.msra.mxu0 0.0
    %637 = vmatprep.subr.mxu0 0.0
    %638 = vmatpush1.msra.mxu0 0.0
    %639 = vmatprep.subr.mxu0 0.0
    %640 = vmatpush1.msra.mxu0 0.0
    %641 = vmatprep.subr.mxu0 0.0
    %642 = vmatpush1.msra.mxu0 0.0
    %643 = vmatprep.subr.mxu0 0.0
    %644 = vmatpush1.msra.mxu0 0.0
    %645 = vmatprep.subr.mxu0 0.0
    %646 = vmatpush1.msra.mxu0 0.0
    %647 = vmatprep.subr.mxu0 0.0
    %648 = vmatpush1.msra.mxu0 0.0
    %649 = vmatprep.subr.mxu0 0.0
    %650 = vmatpush1.msra.mxu0 0.0
    %651 = vmatprep.subr.mxu0 0.0
    %652 = vmatpush1.msra.mxu0 0.0
    %653 = vmatprep.subr.mxu0 0.0
    %654 = vmatpush1.msra.mxu0 0.0
    %655 = vmatprep.mubr.f32.mxu0 0.0
    %656 = vmatmul.mubr.f32.gmra.mrb[0].mxu0 %v589
    %v657 = vpop.f32.mrb[0].mxu0
    %v658 = vadd.f32 %v587, %v657
    %v659 = vpop.f32.mrb[0].mxu0
    %660 = vdwg.mxu0
    %v661 = vmax.f32 %v658, 0.0
    %v662 = vld [vmem:[%s3 + $0x158] sm:$0xff]
    %v663 = vld [vmem:[%s3 + $0x160] sm:$0xff]
    %v664 = vld [vmem:[%s3 + $0x168] sm:$0x1]
    %v665 = vlaneseq
    %v666 = vshrl.u32 %v665, 7
    %v667 = vsub.s32 0, %v666
    %v668 = vrot.slane %v664, %v667
    %v670 = vsel %vm105, %v661, 0
    %672 = vmatprep.subr.mxu0 0.0
    %673 = vmatpush1.msra.mxu0 %v662
    %674 = vmatprep.subr.mxu0 0.0
    %675 = vmatpush1.msra.mxu0 %v663
    %676 = vmatprep.subr.mxu0 0.0
    %677 = vmatpush1.msra.mxu0 0.0
    %678 = vmatprep.subr.mxu0 0.0
    %679 = vmatpush1.msra.mxu0 0.0
    %680 = vmatprep.subr.mxu0 0.0
    %681 = vmatpush1.msra.mxu0 0.0
    %682 = vmatprep.subr.mxu0 0.0
    %683 = vmatpush1.msra.mxu0 0.0
    %684 = vmatprep.subr.mxu0 0.0
    %685 = vmatpush1.msra.mxu0 0.0
    %686 = vmatprep.subr.mxu0 0.0
    %687 = vmatpush1.msra.mxu0 0.0
    %688 = vmatprep.subr.mxu0 0.0
    %689 = vmatpush1.msra.mxu0 0.0
    %690 = vmatprep.subr.mxu0 0.0
    %691 = vmatpush1.msra.mxu0 0.0
    %692 = vmatprep.subr.mxu0 0.0
    %693 = vmatpush1.msra.mxu0 0.0
    %694 = vmatprep.subr.mxu0 0.0
    %695 = vmatpush1.msra.mxu0 0.0
    %696 = vmatprep.subr.mxu0 0.0
    %697 = vmatpush1.msra.mxu0 0.0
    %698 = vmatprep.subr.mxu0 0.0
    %699 = vmatpush1.msra.mxu0 0.0
    %700 = vmatprep.subr.mxu0 0.0
    %701 = vmatpush1.msra.mxu0 0.0
    %702 = vmatprep.subr.mxu0 0.0
    %703 = vmatpush1.msra.mxu0 0.0
    %704 = vmatprep.subr.mxu0 0.0
    %705 = vmatpush1.msra.mxu0 0.0
    %706 = vmatprep.subr.mxu0 0.0
    %707 = vmatpush1.msra.mxu0 0.0
    %708 = vmatprep.subr.mxu0 0.0
    %709 = vmatpush1.msra.mxu0 0.0
    %710 = vmatprep.subr.mxu0 0.0
    %711 = vmatpush1.msra.mxu0 0.0
    %712 = vmatprep.subr.mxu0 0.0
    %713 = vmatpush1.msra.mxu0 0.0
    %714 = vmatprep.subr.mxu0 0.0
    %715 = vmatpush1.msra.mxu0 0.0
    %716 = vmatprep.subr.mxu0 0.0
    %717 = vmatpush1.msra.mxu0 0.0
    %718 = vmatprep.subr.mxu0 0.0
    %719 = vmatpush1.msra.mxu0 0.0
    %720 = vmatprep.subr.mxu0 0.0
    %721 = vmatpush1.msra.mxu0 0.0
    %722 = vmatprep.subr.mxu0 0.0
    %723 = vmatpush1.msra.mxu0 0.0
    %724 = vmatprep.subr.mxu0 0.0
    %725 = vmatpush1.msra.mxu0 0.0
    %726 = vmatprep.subr.mxu0 0.0
    %727 = vmatpush1.msra.mxu0 0.0
    %728 = vmatprep.subr.mxu0 0.0
    %729 = vmatpush1.msra.mxu0 0.0
    %730 = vmatprep.subr.mxu0 0.0
    %731 = vmatpush1.msra.mxu0 0.0
    %732 = vmatprep.subr.mxu0 0.0
    %733 = vmatpush1.msra.mxu0 0.0
    %734 = vmatprep.subr.mxu0 0.0
    %735 = vmatpush1.msra.mxu0 0.0
    %736 = vmatprep.mubr.f32.mxu0 0.0
    %737 = vmatmul.mubr.f32.gmra.mrb[0].mxu0 %v670
    %v738 = vpop.f32.mrb[0].mxu0
    %v739 = vadd.f32 %v668, %v738
    %v740 = vpop.f32.mrb[0].mxu0
    %741 = vdwg.mxu0
    %v742 = vmax.f32 %v739, 0.0
    %v743 = vld [vmem:[%s3 + $0x170] sm:$0xff]
    %v744 = vld [vmem:[%s3 + $0x178] sm:$0xff]
    %v745 = vld [vmem:[%s3 + $0x180] sm:$0x1]
    %v746 = vlaneseq
    %v747 = vshrl.u32 %v746, 7
    %v748 = vsub.s32 0, %v747
    %v749 = vrot.slane %v745, %v748
    %v751 = vsel %vm105, %v742, 0
    %753 = vmatprep.subr.mxu0 0.0
    %754 = vmatpush1.msra.mxu0 %v743
    %755 = vmatprep.subr.mxu0 0.0
    %756 = vmatpush1.msra.mxu0 %v744
    %757 = vmatprep.subr.mxu0 0.0
    %758 = vmatpush1.msra.mxu0 0.0
    %759 = vmatprep.subr.mxu0 0.0
    %760 = vmatpush1.msra.mxu0 0.0
    %761 = vmatprep.subr.mxu0 0.0
    %762 = vmatpush1.msra.mxu0 0.0
    %763 = vmatprep.subr.mxu0 0.0
    %764 = vmatpush1.msra.mxu0 0.0
    %765 = vmatprep.subr.mxu0 0.0
    %766 = vmatpush1.msra.mxu0 0.0
    %767 = vmatprep.subr.mxu0 0.0
    %768 = vmatpush1.msra.mxu0 0.0
    %769 = vmatprep.subr.mxu0 0.0
    %770 = vmatpush1.msra.mxu0 0.0
    %771 = vmatprep.subr.mxu0 0.0
    %772 = vmatpush1.msra.mxu0 0.0
    %773 = vmatprep.subr.mxu0 0.0
    %774 = vmatpush1.msra.mxu0 0.0
    %775 = vmatprep.subr.mxu0 0.0
    %776 = vmatpush1.msra.mxu0 0.0
    %777 = vmatprep.subr.mxu0 0.0
    %778 = vmatpush1.msra.mxu0 0.0
    %779 = vmatprep.subr.mxu0 0.0
    %780 = vmatpush1.msra.mxu0 0.0
    %781 = vmatprep.subr.mxu0 0.0
    %782 = vmatpush1.msra.mxu0 0.0
    %783 = vmatprep.subr.mxu0 0.0
    %784 = vmatpush1.msra.mxu0 0.0
    %785 = vmatprep.subr.mxu0 0.0
    %786 = vmatpush1.msra.mxu0 0.0
    %787 = vmatprep.subr.mxu0 0.0
    %788 = vmatpush1.msra.mxu0 0.0
    %789 = vmatprep.subr.mxu0 0.0
    %790 = vmatpush1.msra.mxu0 0.0
    %791 = vmatprep.subr.mxu0 0.0
    %792 = vmatpush1.msra.mxu0 0.0
    %793 = vmatprep.subr.mxu0 0.0
    %794 = vmatpush1.msra.mxu0 0.0
    %795 = vmatprep.subr.mxu0 0.0
    %796 = vmatpush1.msra.mxu0 0.0
    %797 = vmatprep.subr.mxu0 0.0
    %798 = vmatpush1.msra.mxu0 0.0
    %799 = vmatprep.subr.mxu0 0.0
    %800 = vmatpush1.msra.mxu0 0.0
    %801 = vmatprep.subr.mxu0 0.0
    %802 = vmatpush1.msra.mxu0 0.0
    %803 = vmatprep.subr.mxu0 0.0
    %804 = vmatpush1.msra.mxu0 0.0
    %805 = vmatprep.subr.mxu0 0.0
    %806 = vmatpush1.msra.mxu0 0.0
    %807 = vmatprep.subr.mxu0 0.0
    %808 = vmatpush1.msra.mxu0 0.0
    %809 = vmatprep.subr.mxu0 0.0
    %810 = vmatpush1.msra.mxu0 0.0
    %811 = vmatprep.subr.mxu0 0.0
    %812 = vmatpush1.msra.mxu0 0.0
    %813 = vmatprep.subr.mxu0 0.0
    %814 = vmatpush1.msra.mxu0 0.0
    %815 = vmatprep.subr.mxu0 0.0
    %816 = vmatpush1.msra.mxu0 0.0
    %817 = vmatprep.mubr.f32.mxu0 0.0
    %818 = vmatmul.mubr.f32.gmra.mrb[0].mxu0 %v751
    %v819 = vpop.f32.mrb[0].mxu0
    %v820 = vadd.f32 %v749, %v819
    %v821 = vpop.f32.mrb[0].mxu0
    %822 = vdwg.mxu0
    %v823 = vmax.f32 %v820, 0.0
    %v824 = vadd.f32 %v823, %v97
    %v825 = vld [vmem:[%s3 + $0x70] sm:$0xff]
    %v826 = vld [vmem:[%s3 + $0x78] sm:$0xff]
    %v828 = vsel %vm105, %v824, 0
    %830 = vmatprep.subr.mxu0 0.0
    %831 = vmatpush1.msra.mxu0 %v825
    %832 = vmatprep.subr.mxu0 0.0
    %833 = vmatpush1.msra.mxu0 %v826
    %834 = vmatprep.subr.mxu0 0.0
    %835 = vmatpush1.msra.mxu0 0.0
    %836 = vmatprep.subr.mxu0 0.0
    %837 = vmatpush1.msra.mxu0 0.0
    %838 = vmatprep.subr.mxu0 0.0
    %839 = vmatpush1.msra.mxu0 0.0
    %840 = vmatprep.subr.mxu0 0.0
    %841 = vmatpush1.msra.mxu0 0.0
    %842 = vmatprep.subr.mxu0 0.0
    %843 = vmatpush1.msra.mxu0 0.0
    %844 = vmatprep.subr.mxu0 0.0
    %845 = vmatpush1.msra.mxu0 0.0
    %846 = vmatprep.subr.mxu0 0.0
    %847 = vmatpush1.msra.mxu0 0.0
    %848 = vmatprep.subr.mxu0 0.0
    %849 = vmatpush1.msra.mxu0 0.0
    %850 = vmatprep.subr.mxu0 0.0
    %851 = vmatpush1.msra.mxu0 0.0
    %852 = vmatprep.subr.mxu0 0.0
    %853 = vmatpush1.msra.mxu0 0.0
    %854 = vmatprep.subr.mxu0 0.0
    %855 = vmatpush1.msra.mxu0 0.0
    %856 = vmatprep.subr.mxu0 0.0
    %857 = vmatpush1.msra.mxu0 0.0
    %858 = vmatprep.subr.mxu0 0.0
    %859 = vmatpush1.msra.mxu0 0.0
    %860 = vmatprep.subr.mxu0 0.0
    %861 = vmatpush1.msra.mxu0 0.0
    %862 = vmatprep.subr.mxu0 0.0
    %863 = vmatpush1.msra.mxu0 0.0
    %864 = vmatprep.subr.mxu0 0.0
    %865 = vmatpush1.msra.mxu0 0.0
    %866 = vmatprep.subr.mxu0 0.0
    %867 = vmatpush1.msra.mxu0 0.0
    %868 = vmatprep.subr.mxu0 0.0
    %869 = vmatpush1.msra.mxu0 0.0
    %870 = vmatprep.subr.mxu0 0.0
    %871 = vmatpush1.msra.mxu0 0.0
    %872 = vmatprep.subr.mxu0 0.0
    %873 = vmatpush1.msra.mxu0 0.0
    %874 = vmatprep.subr.mxu0 0.0
    %875 = vmatpush1.msra.mxu0 0.0
    %876 = vmatprep.subr.mxu0 0.0
    %877 = vmatpush1.msra.mxu0 0.0
    %878 = vmatprep.subr.mxu0 0.0
    %879 = vmatpush1.msra.mxu0 0.0
    %880 = vmatprep.subr.mxu0 0.0
    %881 = vmatpush1.msra.mxu0 0.0
    %882 = vmatprep.subr.mxu0 0.0
    %883 = vmatpush1.msra.mxu0 0.0
    %884 = vmatprep.subr.mxu0 0.0
    %885 = vmatpush1.msra.mxu0 0.0
    %886 = vmatprep.subr.mxu0 0.0
    %887 = vmatpush1.msra.mxu0 0.0
    %888 = vmatprep.subr.mxu0 0.0
    %889 = vmatpush1.msra.mxu0 0.0
    %890 = vmatprep.subr.mxu0 0.0
    %891 = vmatpush1.msra.mxu0 0.0
    %892 = vmatprep.subr.mxu0 0.0
    %893 = vmatpush1.msra.mxu0 0.0
    %894 = vmatprep.mubr.f32.mxu0 0.0
    %895 = vmatmul.mubr.f32.gmra.mrb[0].mxu0 %v828
    %v896 = vpop.f32.mrb[0].mxu0
    %v897 = vadd.f32 0.0, %v896
    %v898 = vpop.f32.mrb[0].mxu0
    %899 = vdwg.mxu0
    %900 = vst.msk [vmem:[#allocation2] sm:$0xff] %vm179, %v897
    %v901 = vld [vmem:[%s3 + $0x80] sm:$0xff]
    %v902 = vld [vmem:[%s3 + $0x88] sm:$0xff]
    %903 = vmatprep.subr.mxu0 0.0
    %904 = vmatpush1.msra.mxu0 %v901
    %905 = vmatprep.subr.mxu0 0.0
    %906 = vmatpush1.msra.mxu0 %v902
    %907 = vmatprep.subr.mxu0 0.0
    %908 = vmatpush1.msra.mxu0 0.0
    %909 = vmatprep.subr.mxu0 0.0
    %910 = vmatpush1.msra.mxu0 0.0
    %911 = vmatprep.subr.mxu0 0.0
    %912 = vmatpush1.msra.mxu0 0.0
    %913 = vmatprep.subr.mxu0 0.0
    %914 = vmatpush1.msra.mxu0 0.0
    %915 = vmatprep.subr.mxu0 0.0
    %916 = vmatpush1.msra.mxu0 0.0
    %917 = vmatprep.subr.mxu0 0.0
    %918 = vmatpush1.msra.mxu0 0.0
    %919 = vmatprep.subr.mxu0 0.0
    %920 = vmatpush1.msra.mxu0 0.0
    %921 = vmatprep.subr.mxu0 0.0
    %922 = vmatpush1.msra.mxu0 0.0
    %923 = vmatprep.subr.mxu0 0.0
    %924 = vmatpush1.msra.mxu0 0.0
    %925 = vmatprep.subr.mxu0 0.0
    %926 = vmatpush1.msra.mxu0 0.0
    %927 = vmatprep.subr.mxu0 0.0
    %928 = vmatpush1.msra.mxu0 0.0
    %929 = vmatprep.subr.mxu0 0.0
    %930 = vmatpush1.msra.mxu0 0.0
    %931 = vmatprep.subr.mxu0 0.0
    %932 = vmatpush1.msra.mxu0 0.0
    %933 = vmatprep.subr.mxu0 0.0
    %934 = vmatpush1.msra.mxu0 0.0
    %935 = vmatprep.subr.mxu0 0.0
    %936 = vmatpush1.msra.mxu0 0.0
    %937 = vmatprep.subr.mxu0 0.0
    %938 = vmatpush1.msra.mxu0 0.0
    %939 = vmatprep.subr.mxu0 0.0
    %940 = vmatpush1.msra.mxu0 0.0
    %941 = vmatprep.subr.mxu0 0.0
    %942 = vmatpush1.msra.mxu0 0.0
    %943 = vmatprep.subr.mxu0 0.0
    %944 = vmatpush1.msra.mxu0 0.0
    %945 = vmatprep.subr.mxu0 0.0
    %946 = vmatpush1.msra.mxu0 0.0
    %947 = vmatprep.subr.mxu0 0.0
    %948 = vmatpush1.msra.mxu0 0.0
    %949 = vmatprep.subr.mxu0 0.0
    %950 = vmatpush1.msra.mxu0 0.0
    %951 = vmatprep.subr.mxu0 0.0
    %952 = vmatpush1.msra.mxu0 0.0
    %953 = vmatprep.subr.mxu0 0.0
    %954 = vmatpush1.msra.mxu0 0.0
    %955 = vmatprep.subr.mxu0 0.0
    %956 = vmatpush1.msra.mxu0 0.0
    %957 = vmatprep.subr.mxu0 0.0
    %958 = vmatpush1.msra.mxu0 0.0
    %959 = vmatprep.subr.mxu0 0.0
    %960 = vmatpush1.msra.mxu0 0.0
    %961 = vmatprep.subr.mxu0 0.0
    %962 = vmatpush1.msra.mxu0 0.0
    %963 = vmatprep.subr.mxu0 0.0
    %964 = vmatpush1.msra.mxu0 0.0
    %965 = vmatprep.subr.mxu0 0.0
    %966 = vmatpush1.msra.mxu0 0.0
    %967 = vmatprep.mubr.f32.mxu0 0.0
    %968 = vmatmul.mubr.f32.gmra.mrb[0].mxu0 %v828
    %v969 = vpop.f32.mrb[0].mxu0
    %v970 = vadd.f32 0.0, %v969
    %v971 = vpop.f32.mrb[0].mxu0
    %972 = vdwg.mxu0
    %973 = vst.msk [vmem:[#allocation2 + $0x8] sm:$0xff] %vm179, %v970
    %v974 = vld [vmem:[%s3 + $0x90] sm:$0xff]
    %975 = vst.msk [vmem:[#allocation2 + $0x10] sm:$0xff] %vm179, %v974
    %v976 = vld [vmem:[#allocation2] sm:$0xff]
    %v977 = vld [vmem:[#allocation2 + $0x8] sm:$0xff]
    %v978 = vld [vmem:[#allocation2 + $0x10] sm:$0xff]
    %v979 = vpack.c.bf16 %v977, %v976
    %v980 = vpack.c.bf16 %v978, %v978
    %v982 = vsel %vm270, %v980, 0
    %984 = vmatprep.subr.bf16.mxu0 0
    %985 = vmatpush1.bf16.msra.mxu0 %v979
    %986 = vmatprep.subr.bf16.mxu0 0
    %987 = vmatpush1.bf16.msra.mxu0 %v982
    %988 = vmatprep.subr.bf16.mxu0 0
    %989 = vmatpush1.bf16.msra.mxu0 0
    %990 = vmatprep.subr.bf16.mxu0 0
    %991 = vmatpush1.bf16.msra.mxu0 0
    %992 = vmatprep.subr.bf16.mxu0 0
    %993 = vmatpush1.bf16.msra.mxu0 0
    %994 = vmatprep.subr.bf16.mxu0 0
    %995 = vmatpush1.bf16.msra.mxu0 0
    %996 = vmatprep.subr.bf16.mxu0 0
    %997 = vmatpush1.bf16.msra.mxu0 0
    %998 = vmatprep.subr.bf16.mxu0 0
    %999 = vmatpush1.bf16.msra.mxu0 0
    %1000 = vmatprep.subr.bf16.mxu0 0
    %1001 = vmatpush1.bf16.msra.mxu0 0
    %1002 = vmatprep.subr.bf16.mxu0 0
    %1003 = vmatpush1.bf16.msra.mxu0 0
    %1004 = vmatprep.subr.bf16.mxu0 0
    %1005 = vmatpush1.bf16.msra.mxu0 0
    %1006 = vmatprep.subr.bf16.mxu0 0
    %1007 = vmatpush1.bf16.msra.mxu0 0
    %1008 = vmatprep.subr.bf16.mxu0 0
    %1009 = vmatpush1.bf16.msra.mxu0 0
    %1010 = vmatprep.subr.bf16.mxu0 0
    %1011 = vmatpush1.bf16.msra.mxu0 0
    %1012 = vmatprep.subr.bf16.mxu0 0
    %1013 = vmatpush1.bf16.msra.mxu0 0
    %1014 = vmatprep.subr.bf16.mxu0 0
    %1015 = vmatpush1.bf16.msra.mxu0 0
    %1016 = vmatprep.mubr.bf16.mxu0 0
    %1017 = vmatmul.mubr.bf16.gmra.mrb[0].mxu0 %v268
    %v1018 = vpop.f32.mrb[0].mxu0
    %v1019 = vadd.f32 0.0, %v1018
    %v1020 = vpop.f32.mrb[0].mxu0
    %v1021 = vpop.f32.mrb[0].mxu0
    %v1022 = vadd.f32 0.0, %v1021
    %v1023 = vpop.f32.mrb[0].mxu0
    %1024 = vdwg.mxu0
    %v1025 = vld [vmem:[%s3 + $0x98] sm:$0x1]
    %v1026 = vlaneseq
    %v1027 = vshrl.u32 %v1026, 7
    %v1028 = vsub.s32 0, %v1027
    %v1029 = vrot.slane %v1025, %v1028
    %v1030 = vadd.f32 %v1019, %v1029
    %v1031 = vadd.f32 %v1022, %v1029
    %v1032 = vmax.f32 %v1030, 0.0
    %v1033 = vmax.f32 %v1031, 0.0
    %v1034 = vld [vmem:[%s3 + $0xa0] sm:$0xff]
    %v1035 = vld [vmem:[%s3 + $0xa8] sm:$0xff]
    %v1036 = vld [vmem:[%s3 + $0xb0] sm:$0x1]
    %v1037 = vlaneseq
    %v1038 = vshrl.u32 %v1037, 7
    %v1039 = vsub.s32 0, %v1038
    %v1040 = vrot.slane %v1036, %v1039
    %v1042 = vsel %vm105, %v1032, 0
    %v1045 = vsel %vm105, %v1033, 0
    %1047 = vmatprep.subr.mxu0 0.0
    %1048 = vmatpush1.msra.mxu0 %v1034
    %1049 = vmatprep.subr.mxu0 0.0
    %1050 = vmatpush1.msra.mxu0 %v1035
    %1051 = vmatprep.subr.mxu0 0.0
    %1052 = vmatpush1.msra.mxu0 0.0
    %1053 = vmatprep.subr.mxu0 0.0
    %1054 = vmatpush1.msra.mxu0 0.0
    %1055 = vmatprep.subr.mxu0 0.0
    %1056 = vmatpush1.msra.mxu0 0.0
    %1057 = vmatprep.subr.mxu0 0.0
    %1058 = vmatpush1.msra.mxu0 0.0
    %1059 = vmatprep.subr.mxu0 0.0
    %1060 = vmatpush1.msra.mxu0 0.0
    %1061 = vmatprep.subr.mxu0 0.0
    %1062 = vmatpush1.msra.mxu0 0.0
    %1063 = vmatprep.subr.mxu0 0.0
    %1064 = vmatpush1.msra.mxu0 0.0
    %1065 = vmatprep.subr.mxu0 0.0
    %1066 = vmatpush1.msra.mxu0 0.0
    %1067 = vmatprep.subr.mxu0 0.0
    %1068 = vmatpush1.msra.mxu0 0.0
    %1069 = vmatprep.subr.mxu0 0.0
    %1070 = vmatpush1.msra.mxu0 0.0
    %1071 = vmatprep.subr.mxu0 0.0
    %1072 = vmatpush1.msra.mxu0 0.0
    %1073 = vmatprep.subr.mxu0 0.0
    %1074 = vmatpush1.msra.mxu0 0.0
    %1075 = vmatprep.subr.mxu0 0.0
    %1076 = vmatpush1.msra.mxu0 0.0
    %1077 = vmatprep.subr.mxu0 0.0
    %1078 = vmatpush1.msra.mxu0 0.0
    %1079 = vmatprep.subr.mxu0 0.0
    %1080 = vmatpush1.msra.mxu0 0.0
    %1081 = vmatprep.subr.mxu0 0.0
    %1082 = vmatpush1.msra.mxu0 0.0
    %1083 = vmatprep.subr.mxu0 0.0
    %1084 = vmatpush1.msra.mxu0 0.0
    %1085 = vmatprep.subr.mxu0 0.0
    %1086 = vmatpush1.msra.mxu0 0.0
    %1087 = vmatprep.subr.mxu0 0.0
    %1088 = vmatpush1.msra.mxu0 0.0
    %1089 = vmatprep.subr.mxu0 0.0
    %1090 = vmatpush1.msra.mxu0 0.0
    %1091 = vmatprep.subr.mxu0 0.0
    %1092 = vmatpush1.msra.mxu0 0.0
    %1093 = vmatprep.subr.mxu0 0.0
    %1094 = vmatpush1.msra.mxu0 0.0
    %1095 = vmatprep.subr.mxu0 0.0
    %1096 = vmatpush1.msra.mxu0 0.0
    %1097 = vmatprep.subr.mxu0 0.0
    %1098 = vmatpush1.msra.mxu0 0.0
    %1099 = vmatprep.subr.mxu0 0.0
    %1100 = vmatpush1.msra.mxu0 0.0
    %1101 = vmatprep.subr.mxu0 0.0
    %1102 = vmatpush1.msra.mxu0 0.0
    %1103 = vmatprep.subr.mxu0 0.0
    %1104 = vmatpush1.msra.mxu0 0.0
    %1105 = vmatprep.subr.mxu0 0.0
    %1106 = vmatpush1.msra.mxu0 0.0
    %1107 = vmatprep.subr.mxu0 0.0
    %1108 = vmatpush1.msra.mxu0 0.0
    %1109 = vmatprep.subr.mxu0 0.0
    %1110 = vmatpush1.msra.mxu0 0.0
    %1111 = vmatprep.mubr.f32.mxu0 0.0
    %1112 = vmatmul.mubr.f32.gmra.mrb[0].mxu0 %v1042
    %v1113 = vpop.f32.mrb[0].mxu0
    %v1114 = vadd.f32 %v1040, %v1113
    %v1115 = vpop.f32.mrb[0].mxu0
    %1116 = vmatprep.mubr.f32.mxu0 0.0
    %1117 = vmatmul.mubr.f32.gmra.mrb[0].mxu0 %v1045
    %v1118 = vpop.f32.mrb[0].mxu0
    %v1119 = vadd.f32 %v1040, %v1118
    %v1120 = vpop.f32.mrb[0].mxu0
    %1121 = vdwg.mxu0
    %v1122 = vmax.f32 %v1114, 0.0
    %v1123 = vmax.f32 %v1119, 0.0
    %v1124 = vld [vmem:[%s3 + $0xb8] sm:$0xff]
    %v1125 = vld [vmem:[%s3 + $0xc0] sm:$0xff]
    %v1126 = vld [vmem:[%s3 + $0xc8] sm:$0x1]
    %v1127 = vlaneseq
    %v1128 = vshrl.u32 %v1127, 7
    %v1129 = vsub.s32 0, %v1128
    %v1130 = vrot.slane %v1126, %v1129
    %v1132 = vsel %vm105, %v1122, 0
    %v1135 = vsel %vm105, %v1123, 0
    %1137 = vmatprep.subr.mxu0 0.0
    %1138 = vmatpush1.msra.mxu0 %v1124
    %1139 = vmatprep.subr.mxu0 0.0
    %1140 = vmatpush1.msra.mxu0 %v1125
    %1141 = vmatprep.subr.mxu0 0.0
    %1142 = vmatpush1.msra.mxu0 0.0
    %1143 = vmatprep.subr.mxu0 0.0
    %1144 = vmatpush1.msra.mxu0 0.0
    %1145 = vmatprep.subr.mxu0 0.0
    %1146 = vmatpush1.msra.mxu0 0.0
    %1147 = vmatprep.subr.mxu0 0.0
    %1148 = vmatpush1.msra.mxu0 0.0
    %1149 = vmatprep.subr.mxu0 0.0
    %1150 = vmatpush1.msra.mxu0 0.0
    %1151 = vmatprep.subr.mxu0 0.0
    %1152 = vmatpush1.msra.mxu0 0.0
    %1153 = vmatprep.subr.mxu0 0.0
    %1154 = vmatpush1.msra.mxu0 0.0
    %1155 = vmatprep.subr.mxu0 0.0
    %1156 = vmatpush1.msra.mxu0 0.0
    %1157 = vmatprep.subr.mxu0 0.0
    %1158 = vmatpush1.msra.mxu0 0.0
    %1159 = vmatprep.subr.mxu0 0.0
    %1160 = vmatpush1.msra.mxu0 0.0
    %1161 = vmatprep.subr.mxu0 0.0
    %1162 = vmatpush1.msra.mxu0 0.0
    %1163 = vmatprep.subr.mxu0 0.0
    %1164 = vmatpush1.msra.mxu0 0.0
    %1165 = vmatprep.subr.mxu0 0.0
    %1166 = vmatpush1.msra.mxu0 0.0
    %1167 = vmatprep.subr.mxu0 0.0
    %1168 = vmatpush1.msra.mxu0 0.0
    %1169 = vmatprep.subr.mxu0 0.0
    %1170 = vmatpush1.msra.mxu0 0.0
    %1171 = vmatprep.subr.mxu0 0.0
    %1172 = vmatpush1.msra.mxu0 0.0
    %1173 = vmatprep.subr.mxu0 0.0
    %1174 = vmatpush1.msra.mxu0 0.0
    %1175 = vmatprep.subr.mxu0 0.0
    %1176 = vmatpush1.msra.mxu0 0.0
    %1177 = vmatprep.subr.mxu0 0.0
    %1178 = vmatpush1.msra.mxu0 0.0
    %1179 = vmatprep.subr.mxu0 0.0
    %1180 = vmatpush1.msra.mxu0 0.0
    %1181 = vmatprep.subr.mxu0 0.0
    %1182 = vmatpush1.msra.mxu0 0.0
    %1183 = vmatprep.subr.mxu0 0.0
    %1184 = vmatpush1.msra.mxu0 0.0
    %1185 = vmatprep.subr.mxu0 0.0
    %1186 = vmatpush1.msra.mxu0 0.0
    %1187 = vmatprep.subr.mxu0 0.0
    %1188 = vmatpush1.msra.mxu0 0.0
    %1189 = vmatprep.subr.mxu0 0.0
    %1190 = vmatpush1.msra.mxu0 0.0
    %1191 = vmatprep.subr.mxu0 0.0
    %1192 = vmatpush1.msra.mxu0 0.0
    %1193 = vmatprep.subr.mxu0 0.0
    %1194 = vmatpush1.msra.mxu0 0.0
    %1195 = vmatprep.subr.mxu0 0.0
    %1196 = vmatpush1.msra.mxu0 0.0
    %1197 = vmatprep.subr.mxu0 0.0
    %1198 = vmatpush1.msra.mxu0 0.0
    %1199 = vmatprep.subr.mxu0 0.0
    %1200 = vmatpush1.msra.mxu0 0.0
    %1201 = vmatprep.mubr.f32.mxu0 0.0
    %1202 = vmatmul.mubr.f32.gmra.mrb[0].mxu0 %v1132
    %v1203 = vpop.f32.mrb[0].mxu0
    %v1204 = vadd.f32 %v1130, %v1203
    %v1205 = vpop.f32.mrb[0].mxu0
    %1206 = vmatprep.mubr.f32.mxu0 0.0
    %1207 = vmatmul.mubr.f32.gmra.mrb[0].mxu0 %v1135
    %v1208 = vpop.f32.mrb[0].mxu0
    %v1209 = vadd.f32 %v1130, %v1208
    %v1210 = vpop.f32.mrb[0].mxu0
    %1211 = vdwg.mxu0
    %v1212 = vmax.f32 %v1204, 0.0
    %v1213 = vmax.f32 %v1209, 0.0
    %v1214 = vxor.u32 %v1212, 2147483648
    %v1215 = vxor.u32 %v1213, 2147483648
    %v1216 = vmul.f32 %v1214, 1.442695
    %v1217 = vpow.pop %v1216
    %v1218 = vmul.f32 %v1215, 1.442695
    %v1219 = vpow.pop %v1218
    %v1220 = vadd.f32 %v1217, 1.0
    %v1221 = vadd.f32 %v1219, 1.0
    %v1222 = vrcp.pop %v1220
    %v1223 = vmul.f32 1.0, %v1222
    %v1224 = vrcp.pop %v1221
    %v1225 = vmul.f32 1.0, %v1224
    %1228 = vrot.lane.b32.xlu0 %v1223, 16
    %v1229 = vpop.permute.xlu0 %1228
    %1230 = vrot.lane.b32.xlu0 %v1225, 16
    %v1231 = vpop.permute.xlu0 %1230
    %v1234 = vmul.f32 %v1019, %v1229
    %v1235 = vmul.f32 %v1022, %v1231
    %v1236 = vpack.c.bf16 %v1235, %v1234
    %1238 = vrot.lane.b32.xlu0 %v1236, 112
    %v1239 = vpop.permute.xlu0 %1238
    %1241 = vmatprep.subr.bf16.mxu0 0
    %1242 = vmatpush1.bf16.msra.mxu0 %v1239
    %1243 = vmatprep.subr.bf16.mxu0 0
    %1244 = vmatpush1.bf16.msra.mxu0 0
    %1245 = vmatprep.subr.bf16.mxu0 0
    %1246 = vmatpush1.bf16.msra.mxu0 0
    %1247 = vmatprep.subr.bf16.mxu0 0
    %1248 = vmatpush1.bf16.msra.mxu0 0
    %1249 = vmatprep.subr.bf16.mxu0 0
    %1250 = vmatpush1.bf16.msra.mxu0 0
    %1251 = vmatprep.subr.bf16.mxu0 0
    %1252 = vmatpush1.bf16.msra.mxu0 0
    %1253 = vmatprep.subr.bf16.mxu0 0
    %1254 = vmatpush1.bf16.msra.mxu0 0
    %1255 = vmatprep.subr.bf16.mxu0 0
    %1256 = vmatpush1.bf16.msra.mxu0 0
    %1257 = vmatprep.subr.bf16.mxu0 0
    %1258 = vmatpush1.bf16.msra.mxu0 0
    %1259 = vmatprep.subr.bf16.mxu0 0
    %1260 = vmatpush1.bf16.msra.mxu0 0
    %1261 = vmatprep.subr.bf16.mxu0 0
    %1262 = vmatpush1.bf16.msra.mxu0 0
    %1263 = vmatprep.subr.bf16.mxu0 0
    %1264 = vmatpush1.bf16.msra.mxu0 0
    %1265 = vmatprep.subr.bf16.mxu0 0
    %1266 = vmatpush1.bf16.msra.mxu0 0
    %1267 = vmatprep.subr.bf16.mxu0 0
    %1268 = vmatpush1.bf16.msra.mxu0 0
    %1269 = vmatprep.subr.bf16.mxu0 0
    %1270 = vmatpush1.bf16.msra.mxu0 0
    %1271 = vmatprep.subr.bf16.mxu0 0
    %1272 = vmatpush1.bf16.msra.mxu0 0
    %1273 = vmatprep.mubr.bf16.mxu0 0
    %1274 = vmatmul.mubr.bf16.gmra.mrb[0].mxu0 %v532
    %v1275 = vpop.f32.mrb[0].mxu0
    %v1276 = vadd.f32 0.0, %v1275
    %v1277 = vpop.f32.mrb[0].mxu0
    %v1278 = vpop.f32.mrb[0].mxu0
    %v1279 = vpop.f32.mrb[0].mxu0
    %1280 = vdwg.mxu0
    %1282 = vrot.lane.b32.xlu0 %v1276, 16
    %v1283 = vpop.permute.xlu0 %1282
    %v1285 = vsel %vm105, %v824, %v1283
    %v1286 = vld [vmem:[%s3 + $0x188] sm:$0xff]
    %v1287 = vld [vmem:[%s3 + $0x190] sm:$0xff]
    %v1288 = vld [vmem:[%s3 + $0x198] sm:$0xff]
    %v1289 = vld [vmem:[%s3 + $0x1a0] sm:$0xff]
    %v1290 = vld [vmem:[%s3 + $0x1a8] sm:$0x1]
    %v1291 = vlaneseq
    %v1292 = vshrl.u32 %v1291, 7
    %v1293 = vsub.s32 0, %v1292
    %v1294 = vrot.slane %v1290, %v1293
    %v1296 = vsel %vm179, %v1285, 0
    %1298 = vmatprep.subr.mxu0 0.0
    %1299 = vmatpush1.msra.mxu0 %v1286
    %1300 = vmatprep.subr.mxu0 0.0
    %1301 = vmatpush1.msra.mxu0 %v1287
    %1302 = vmatprep.subr.mxu0 0.0
    %1303 = vmatpush1.msra.mxu0 %v1288
    %1304 = vmatprep.subr.mxu0 0.0
    %1305 = vmatpush1.msra.mxu0 %v1289
    %1306 = vmatprep.subr.mxu0 0.0
    %1307 = vmatpush1.msra.mxu0 0.0
    %1308 = vmatprep.subr.mxu0 0.0
    %1309 = vmatpush1.msra.mxu0 0.0
    %1310 = vmatprep.subr.mxu0 0.0
    %1311 = vmatpush1.msra.mxu0 0.0
    %1312 = vmatprep.subr.mxu0 0.0
    %1313 = vmatpush1.msra.mxu0 0.0
    %1314 = vmatprep.subr.mxu0 0.0
    %1315 = vmatpush1.msra.mxu0 0.0
    %1316 = vmatprep.subr.mxu0 0.0
    %1317 = vmatpush1.msra.mxu0 0.0
    %1318 = vmatprep.subr.mxu0 0.0
    %1319 = vmatpush1.msra.mxu0 0.0
    %1320 = vmatprep.subr.mxu0 0.0
    %1321 = vmatpush1.msra.mxu0 0.0
    %1322 = vmatprep.subr.mxu0 0.0
    %1323 = vmatpush1.msra.mxu0 0.0
    %1324 = vmatprep.subr.mxu0 0.0
    %1325 = vmatpush1.msra.mxu0 0.0
    %1326 = vmatprep.subr.mxu0 0.0
    %1327 = vmatpush1.msra.mxu0 0.0
    %1328 = vmatprep.subr.mxu0 0.0
    %1329 = vmatpush1.msra.mxu0 0.0
    %1330 = vmatprep.subr.mxu0 0.0
    %1331 = vmatpush1.msra.mxu0 0.0
    %1332 = vmatprep.subr.mxu0 0.0
    %1333 = vmatpush1.msra.mxu0 0.0
    %1334 = vmatprep.subr.mxu0 0.0
    %1335 = vmatpush1.msra.mxu0 0.0
    %1336 = vmatprep.subr.mxu0 0.0
    %1337 = vmatpush1.msra.mxu0 0.0
    %1338 = vmatprep.subr.mxu0 0.0
    %1339 = vmatpush1.msra.mxu0 0.0
    %1340 = vmatprep.subr.mxu0 0.0
    %1341 = vmatpush1.msra.mxu0 0.0
    %1342 = vmatprep.subr.mxu0 0.0
    %1343 = vmatpush1.msra.mxu0 0.0
    %1344 = vmatprep.subr.mxu0 0.0
    %1345 = vmatpush1.msra.mxu0 0.0
    %1346 = vmatprep.subr.mxu0 0.0
    %1347 = vmatpush1.msra.mxu0 0.0
    %1348 = vmatprep.subr.mxu0 0.0
    %1349 = vmatpush1.msra.mxu0 0.0
    %1350 = vmatprep.subr.mxu0 0.0
    %1351 = vmatpush1.msra.mxu0 0.0
    %1352 = vmatprep.subr.mxu0 0.0
    %1353 = vmatpush1.msra.mxu0 0.0
    %1354 = vmatprep.subr.mxu0 0.0
    %1355 = vmatpush1.msra.mxu0 0.0
    %1356 = vmatprep.subr.mxu0 0.0
    %1357 = vmatpush1.msra.mxu0 0.0
    %1358 = vmatprep.subr.mxu0 0.0
    %1359 = vmatpush1.msra.mxu0 0.0
    %1360 = vmatprep.subr.mxu0 0.0
    %1361 = vmatpush1.msra.mxu0 0.0
    %1362 = vmatprep.mubr.f32.mxu0 0.0
    %1363 = vmatmul.mubr.f32.gmra.mrb[0].mxu0 %v1296
    %v1364 = vpop.f32.mrb[0].mxu0
    %v1365 = vadd.f32 %v1294, %v1364
    %v1366 = vpop.f32.mrb[0].mxu0
    %1367 = vdwg.mxu0
    %v1368 = vmax.f32 %v1365, 0.0
    %v1369 = vld [vmem:[%s3 + $0x1b0] sm:$0xff]
    %v1370 = vld [vmem:[%s3 + $0x1b8] sm:$0xff]
    %v1371 = vld [vmem:[%s3 + $0x1c0] sm:$0x1]
    %v1372 = vlaneseq
    %v1373 = vshrl.u32 %v1372, 7
    %v1374 = vsub.s32 0, %v1373
    %v1375 = vrot.slane %v1371, %v1374
    %v1377 = vsel %vm105, %v1368, 0
    %1379 = vmatprep.subr.mxu0 0.0
    %1380 = vmatpush1.msra.mxu0 %v1369
    %1381 = vmatprep.subr.mxu0 0.0
    %1382 = vmatpush1.msra.mxu0 %v1370
    %1383 = vmatprep.subr.mxu0 0.0
    %1384 = vmatpush1.msra.mxu0 0.0
    %1385 = vmatprep.subr.mxu0 0.0
    %1386 = vmatpush1.msra.mxu0 0.0
    %1387 = vmatprep.subr.mxu0 0.0
    %1388 = vmatpush1.msra.mxu0 0.0
    %1389 = vmatprep.subr.mxu0 0.0
    %1390 = vmatpush1.msra.mxu0 0.0
    %1391 = vmatprep.subr.mxu0 0.0
    %1392 = vmatpush1.msra.mxu0 0.0
    %1393 = vmatprep.subr.mxu0 0.0
    %1394 = vmatpush1.msra.mxu0 0.0
    %1395 = vmatprep.subr.mxu0 0.0
    %1396 = vmatpush1.msra.mxu0 0.0
    %1397 = vmatprep.subr.mxu0 0.0
    %1398 = vmatpush1.msra.mxu0 0.0
    %1399 = vmatprep.subr.mxu0 0.0
    %1400 = vmatpush1.msra.mxu0 0.0
    %1401 = vmatprep.subr.mxu0 0.0
    %1402 = vmatpush1.msra.mxu0 0.0
    %1403 = vmatprep.subr.mxu0 0.0
    %1404 = vmatpush1.msra.mxu0 0.0
    %1405 = vmatprep.subr.mxu0 0.0
    %1406 = vmatpush1.msra.mxu0 0.0
    %1407 = vmatprep.subr.mxu0 0.0
    %1408 = vmatpush1.msra.mxu0 0.0
    %1409 = vmatprep.subr.mxu0 0.0
    %1410 = vmatpush1.msra.mxu0 0.0
    %1411 = vmatprep.subr.mxu0 0.0
    %1412 = vmatpush1.msra.mxu0 0.0
    %1413 = vmatprep.subr.mxu0 0.0
    %1414 = vmatpush1.msra.mxu0 0.0
    %1415 = vmatprep.subr.mxu0 0.0
    %1416 = vmatpush1.msra.mxu0 0.0
    %1417 = vmatprep.subr.mxu0 0.0
    %1418 = vmatpush1.msra.mxu0 0.0
    %1419 = vmatprep.subr.mxu0 0.0
    %1420 = vmatpush1.msra.mxu0 0.0
    %1421 = vmatprep.subr.mxu0 0.0
    %1422 = vmatpush1.msra.mxu0 0.0
    %1423 = vmatprep.subr.mxu0 0.0
    %1424 = vmatpush1.msra.mxu0 0.0
    %1425 = vmatprep.subr.mxu0 0.0
    %1426 = vmatpush1.msra.mxu0 0.0
    %1427 = vmatprep.subr.mxu0 0.0
    %1428 = vmatpush1.msra.mxu0 0.0
    %1429 = vmatprep.subr.mxu0 0.0
    %1430 = vmatpush1.msra.mxu0 0.0
    %1431 = vmatprep.subr.mxu0 0.0
    %1432 = vmatpush1.msra.mxu0 0.0
    %1433 = vmatprep.subr.mxu0 0.0
    %1434 = vmatpush1.msra.mxu0 0.0
    %1435 = vmatprep.subr.mxu0 0.0
    %1436 = vmatpush1.msra.mxu0 0.0
    %1437 = vmatprep.subr.mxu0 0.0
    %1438 = vmatpush1.msra.mxu0 0.0
    %1439 = vmatprep.subr.mxu0 0.0
    %1440 = vmatpush1.msra.mxu0 0.0
    %1441 = vmatprep.subr.mxu0 0.0
    %1442 = vmatpush1.msra.mxu0 0.0
    %1443 = vmatprep.mubr.f32.mxu0 0.0
    %1444 = vmatmul.mubr.f32.gmra.mrb[0].mxu0 %v1377
    %v1445 = vpop.f32.mrb[0].mxu0
    %v1446 = vadd.f32 %v1375, %v1445
    %v1447 = vpop.f32.mrb[0].mxu0
    %1448 = vdwg.mxu0
    %v1449 = vmax.f32 %v1446, 0.0
    %v1450 = vld [vmem:[%s3 + $0x1c8] sm:$0xff]
    %v1451 = vld [vmem:[%s3 + $0x1d0] sm:$0xff]
    %v1452 = vld [vmem:[%s3 + $0x1d8] sm:$0x1]
    %v1453 = vlaneseq
    %v1454 = vshrl.u32 %v1453, 7
    %v1455 = vsub.s32 0, %v1454
    %v1456 = vrot.slane %v1452, %v1455
    %v1458 = vsel %vm105, %v1449, 0
    %1460 = vmatprep.subr.mxu0 0.0
    %1461 = vmatpush1.msra.mxu0 %v1450
    %1462 = vmatprep.subr.mxu0 0.0
    %1463 = vmatpush1.msra.mxu0 %v1451
    %1464 = vmatprep.subr.mxu0 0.0
    %1465 = vmatpush1.msra.mxu0 0.0
    %1466 = vmatprep.subr.mxu0 0.0
    %1467 = vmatpush1.msra.mxu0 0.0
    %1468 = vmatprep.subr.mxu0 0.0
    %1469 = vmatpush1.msra.mxu0 0.0
    %1470 = vmatprep.subr.mxu0 0.0
    %1471 = vmatpush1.msra.mxu0 0.0
    %1472 = vmatprep.subr.mxu0 0.0
    %1473 = vmatpush1.msra.mxu0 0.0
    %1474 = vmatprep.subr.mxu0 0.0
    %1475 = vmatpush1.msra.mxu0 0.0
    %1476 = vmatprep.subr.mxu0 0.0
    %1477 = vmatpush1.msra.mxu0 0.0
    %1478 = vmatprep.subr.mxu0 0.0
    %1479 = vmatpush1.msra.mxu0 0.0
    %1480 = vmatprep.subr.mxu0 0.0
    %1481 = vmatpush1.msra.mxu0 0.0
    %1482 = vmatprep.subr.mxu0 0.0
    %1483 = vmatpush1.msra.mxu0 0.0
    %1484 = vmatprep.subr.mxu0 0.0
    %1485 = vmatpush1.msra.mxu0 0.0
    %1486 = vmatprep.subr.mxu0 0.0
    %1487 = vmatpush1.msra.mxu0 0.0
    %1488 = vmatprep.subr.mxu0 0.0
    %1489 = vmatpush1.msra.mxu0 0.0
    %1490 = vmatprep.subr.mxu0 0.0
    %1491 = vmatpush1.msra.mxu0 0.0
    %1492 = vmatprep.subr.mxu0 0.0
    %1493 = vmatpush1.msra.mxu0 0.0
    %1494 = vmatprep.subr.mxu0 0.0
    %1495 = vmatpush1.msra.mxu0 0.0
    %1496 = vmatprep.subr.mxu0 0.0
    %1497 = vmatpush1.msra.mxu0 0.0
    %1498 = vmatprep.subr.mxu0 0.0
    %1499 = vmatpush1.msra.mxu0 0.0
    %1500 = vmatprep.subr.mxu0 0.0
    %1501 = vmatpush1.msra.mxu0 0.0
    %1502 = vmatprep.subr.mxu0 0.0
    %1503 = vmatpush1.msra.mxu0 0.0
    %1504 = vmatprep.subr.mxu0 0.0
    %1505 = vmatpush1.msra.mxu0 0.0
    %1506 = vmatprep.subr.mxu0 0.0
    %1507 = vmatpush1.msra.mxu0 0.0
    %1508 = vmatprep.subr.mxu0 0.0
    %1509 = vmatpush1.msra.mxu0 0.0
    %1510 = vmatprep.subr.mxu0 0.0
    %1511 = vmatpush1.msra.mxu0 0.0
    %1512 = vmatprep.subr.mxu0 0.0
    %1513 = vmatpush1.msra.mxu0 0.0
    %1514 = vmatprep.subr.mxu0 0.0
    %1515 = vmatpush1.msra.mxu0 0.0
    %1516 = vmatprep.subr.mxu0 0.0
    %1517 = vmatpush1.msra.mxu0 0.0
    %1518 = vmatprep.subr.mxu0 0.0
    %1519 = vmatpush1.msra.mxu0 0.0
    %1520 = vmatprep.subr.mxu0 0.0
    %1521 = vmatpush1.msra.mxu0 0.0
    %1522 = vmatprep.subr.mxu0 0.0
    %1523 = vmatpush1.msra.mxu0 0.0
    %1524 = vmatprep.mubr.f32.mxu0 0.0
    %1525 = vmatmul.mubr.f32.gmra.mrb[0].mxu0 %v1458
    %v1526 = vpop.f32.mrb[0].mxu0
    %v1527 = vadd.f32 %v1456, %v1526
    %v1528 = vpop.f32.mrb[0].mxu0
    %1529 = vdwg.mxu0
    %v1530 = vmax.f32 %v1527, 0.0
    %v1531 = vadd.f32 %v1530, %v824
    %v1532 = vld [vmem:[%s3 + $0xd0] sm:$0xff]
    %v1533 = vld [vmem:[%s3 + $0xd8] sm:$0xff]
    %v1535 = vsel %vm105, %v1531, 0
    %1537 = vmatprep.subr.mxu0 0.0
    %1538 = vmatpush1.msra.mxu0 %v1532
    %1539 = vmatprep.subr.mxu0 0.0
    %1540 = vmatpush1.msra.mxu0 %v1533
    %1541 = vmatprep.subr.mxu0 0.0
    %1542 = vmatpush1.msra.mxu0 0.0
    %1543 = vmatprep.subr.mxu0 0.0
    %1544 = vmatpush1.msra.mxu0 0.0
    %1545 = vmatprep.subr.mxu0 0.0
    %1546 = vmatpush1.msra.mxu0 0.0
    %1547 = vmatprep.subr.mxu0 0.0
    %1548 = vmatpush1.msra.mxu0 0.0
    %1549 = vmatprep.subr.mxu0 0.0
    %1550 = vmatpush1.msra.mxu0 0.0
    %1551 = vmatprep.subr.mxu0 0.0
    %1552 = vmatpush1.msra.mxu0 0.0
    %1553 = vmatprep.subr.mxu0 0.0
    %1554 = vmatpush1.msra.mxu0 0.0
    %1555 = vmatprep.subr.mxu0 0.0
    %1556 = vmatpush1.msra.mxu0 0.0
    %1557 = vmatprep.subr.mxu0 0.0
    %1558 = vmatpush1.msra.mxu0 0.0
    %1559 = vmatprep.subr.mxu0 0.0
    %1560 = vmatpush1.msra.mxu0 0.0
    %1561 = vmatprep.subr.mxu0 0.0
    %1562 = vmatpush1.msra.mxu0 0.0
    %1563 = vmatprep.subr.mxu0 0.0
    %1564 = vmatpush1.msra.mxu0 0.0
    %1565 = vmatprep.subr.mxu0 0.0
    %1566 = vmatpush1.msra.mxu0 0.0
    %1567 = vmatprep.subr.mxu0 0.0
    %1568 = vmatpush1.msra.mxu0 0.0
    %1569 = vmatprep.subr.mxu0 0.0
    %1570 = vmatpush1.msra.mxu0 0.0
    %1571 = vmatprep.subr.mxu0 0.0
    %1572 = vmatpush1.msra.mxu0 0.0
    %1573 = vmatprep.subr.mxu0 0.0
    %1574 = vmatpush1.msra.mxu0 0.0
    %1575 = vmatprep.subr.mxu0 0.0
    %1576 = vmatpush1.msra.mxu0 0.0
    %1577 = vmatprep.subr.mxu0 0.0
    %1578 = vmatpush1.msra.mxu0 0.0
    %1579 = vmatprep.subr.mxu0 0.0
    %1580 = vmatpush1.msra.mxu0 0.0
    %1581 = vmatprep.subr.mxu0 0.0
    %1582 = vmatpush1.msra.mxu0 0.0
    %1583 = vmatprep.subr.mxu0 0.0
    %1584 = vmatpush1.msra.mxu0 0.0
    %1585 = vmatprep.subr.mxu0 0.0
    %1586 = vmatpush1.msra.mxu0 0.0
    %1587 = vmatprep.subr.mxu0 0.0
    %1588 = vmatpush1.msra.mxu0 0.0
    %1589 = vmatprep.subr.mxu0 0.0
    %1590 = vmatpush1.msra.mxu0 0.0
    %1591 = vmatprep.subr.mxu0 0.0
    %1592 = vmatpush1.msra.mxu0 0.0
    %1593 = vmatprep.subr.mxu0 0.0
    %1594 = vmatpush1.msra.mxu0 0.0
    %1595 = vmatprep.subr.mxu0 0.0
    %1596 = vmatpush1.msra.mxu0 0.0
    %1597 = vmatprep.subr.mxu0 0.0
    %1598 = vmatpush1.msra.mxu0 0.0
    %1599 = vmatprep.subr.mxu0 0.0
    %1600 = vmatpush1.msra.mxu0 0.0
    %1601 = vmatprep.mubr.f32.mxu0 0.0
    %1602 = vmatmul.mubr.f32.gmra.mrb[0].mxu0 %v1535
    %v1603 = vpop.f32.mrb[0].mxu0
    %v1604 = vadd.f32 0.0, %v1603
    %v1605 = vpop.f32.mrb[0].mxu0
    %1606 = vdwg.mxu0
    %1607 = vst.msk [vmem:[#allocation2] sm:$0xff] %vm179, %v1604
    %v1608 = vld [vmem:[%s3 + $0xe0] sm:$0xff]
    %v1609 = vld [vmem:[%s3 + $0xe8] sm:$0xff]
    %1610 = vmatprep.subr.mxu0 0.0
    %1611 = vmatpush1.msra.mxu0 %v1608
    %1612 = vmatprep.subr.mxu0 0.0
    %1613 = vmatpush1.msra.mxu0 %v1609
    %1614 = vmatprep.subr.mxu0 0.0
    %1615 = vmatpush1.msra.mxu0 0.0
    %1616 = vmatprep.subr.mxu0 0.0
    %1617 = vmatpush1.msra.mxu0 0.0
    %1618 = vmatprep.subr.mxu0 0.0
    %1619 = vmatpush1.msra.mxu0 0.0
    %1620 = vmatprep.subr.mxu0 0.0
    %1621 = vmatpush1.msra.mxu0 0.0
    %1622 = vmatprep.subr.mxu0 0.0
    %1623 = vmatpush1.msra.mxu0 0.0
    %1624 = vmatprep.subr.mxu0 0.0
    %1625 = vmatpush1.msra.mxu0 0.0
    %1626 = vmatprep.subr.mxu0 0.0
    %1627 = vmatpush1.msra.mxu0 0.0
    %1628 = vmatprep.subr.mxu0 0.0
    %1629 = vmatpush1.msra.mxu0 0.0
    %1630 = vmatprep.subr.mxu0 0.0
    %1631 = vmatpush1.msra.mxu0 0.0
    %1632 = vmatprep.subr.mxu0 0.0
    %1633 = vmatpush1.msra.mxu0 0.0
    %1634 = vmatprep.subr.mxu0 0.0
    %1635 = vmatpush1.msra.mxu0 0.0
    %1636 = vmatprep.subr.mxu0 0.0
    %1637 = vmatpush1.msra.mxu0 0.0
    %1638 = vmatprep.subr.mxu0 0.0
    %1639 = vmatpush1.msra.mxu0 0.0
    %1640 = vmatprep.subr.mxu0 0.0
    %1641 = vmatpush1.msra.mxu0 0.0
    %1642 = vmatprep.subr.mxu0 0.0
    %1643 = vmatpush1.msra.mxu0 0.0
    %1644 = vmatprep.subr.mxu0 0.0
    %1645 = vmatpush1.msra.mxu0 0.0
    %1646 = vmatprep.subr.mxu0 0.0
    %1647 = vmatpush1.msra.mxu0 0.0
    %1648 = vmatprep.subr.mxu0 0.0
    %1649 = vmatpush1.msra.mxu0 0.0
    %1650 = vmatprep.subr.mxu0 0.0
    %1651 = vmatpush1.msra.mxu0 0.0
    %1652 = vmatprep.subr.mxu0 0.0
    %1653 = vmatpush1.msra.mxu0 0.0
    %1654 = vmatprep.subr.mxu0 0.0
    %1655 = vmatpush1.msra.mxu0 0.0
    %1656 = vmatprep.subr.mxu0 0.0
    %1657 = vmatpush1.msra.mxu0 0.0
    %1658 = vmatprep.subr.mxu0 0.0
    %1659 = vmatpush1.msra.mxu0 0.0
    %1660 = vmatprep.subr.mxu0 0.0
    %1661 = vmatpush1.msra.mxu0 0.0
    %1662 = vmatprep.subr.mxu0 0.0
    %1663 = vmatpush1.msra.mxu0 0.0
    %1664 = vmatprep.subr.mxu0 0.0
    %1665 = vmatpush1.msra.mxu0 0.0
    %1666 = vmatprep.subr.mxu0 0.0
    %1667 = vmatpush1.msra.mxu0 0.0
    %1668 = vmatprep.subr.mxu0 0.0
    %1669 = vmatpush1.msra.mxu0 0.0
    %1670 = vmatprep.subr.mxu0 0.0
    %1671 = vmatpush1.msra.mxu0 0.0
    %1672 = vmatprep.subr.mxu0 0.0
    %1673 = vmatpush1.msra.mxu0 0.0
    %1674 = vmatprep.mubr.f32.mxu0 0.0
    %1675 = vmatmul.mubr.f32.gmra.mrb[0].mxu0 %v1535
    %v1676 = vpop.f32.mrb[0].mxu0
    %v1677 = vadd.f32 0.0, %v1676
    %v1678 = vpop.f32.mrb[0].mxu0
    %1679 = vdwg.mxu0
    %1680 = vst.msk [vmem:[#allocation2 + $0x8] sm:$0xff] %vm179, %v1677
    %v1681 = vld [vmem:[%s3 + $0xf0] sm:$0xff]
    %1682 = vst.msk [vmem:[#allocation2 + $0x10] sm:$0xff] %vm179, %v1681
    %v1683 = vld [vmem:[#allocation2] sm:$0xff]
    %v1684 = vld [vmem:[#allocation2 + $0x8] sm:$0xff]
    %v1685 = vld [vmem:[#allocation2 + $0x10] sm:$0xff]
    %v1686 = vpack.c.bf16 %v1684, %v1683
    %v1687 = vpack.c.bf16 %v1685, %v1685
    %v1689 = vsel %vm270, %v1687, 0
    %1691 = vmatprep.subr.bf16.mxu0 0
    %1692 = vmatpush1.bf16.msra.mxu0 %v1686
    %1693 = vmatprep.subr.bf16.mxu0 0
    %1694 = vmatpush1.bf16.msra.mxu0 %v1689
    %1695 = vmatprep.subr.bf16.mxu0 0
    %1696 = vmatpush1.bf16.msra.mxu0 0
    %1697 = vmatprep.subr.bf16.mxu0 0
    %1698 = vmatpush1.bf16.msra.mxu0 0
    %1699 = vmatprep.subr.bf16.mxu0 0
    %1700 = vmatpush1.bf16.msra.mxu0 0
    %1701 = vmatprep.subr.bf16.mxu0 0
    %1702 = vmatpush1.bf16.msra.mxu0 0
    %1703 = vmatprep.subr.bf16.mxu0 0
    %1704 = vmatpush1.bf16.msra.mxu0 0
    %1705 = vmatprep.subr.bf16.mxu0 0
    %1706 = vmatpush1.bf16.msra.mxu0 0
    %1707 = vmatprep.subr.bf16.mxu0 0
    %1708 = vmatpush1.bf16.msra.mxu0 0
    %1709 = vmatprep.subr.bf16.mxu0 0
    %1710 = vmatpush1.bf16.msra.mxu0 0
    %1711 = vmatprep.subr.bf16.mxu0 0
    %1712 = vmatpush1.bf16.msra.mxu0 0
    %1713 = vmatprep.subr.bf16.mxu0 0
    %1714 = vmatpush1.bf16.msra.mxu0 0
    %1715 = vmatprep.subr.bf16.mxu0 0
    %1716 = vmatpush1.bf16.msra.mxu0 0
    %1717 = vmatprep.subr.bf16.mxu0 0
    %1718 = vmatpush1.bf16.msra.mxu0 0
    %1719 = vmatprep.subr.bf16.mxu0 0
    %1720 = vmatpush1.bf16.msra.mxu0 0
    %1721 = vmatprep.subr.bf16.mxu0 0
    %1722 = vmatpush1.bf16.msra.mxu0 0
    %1723 = vmatprep.mubr.bf16.mxu0 0
    %1724 = vmatmul.mubr.bf16.gmra.mrb[0].mxu0 %v268
    %v1725 = vpop.f32.mrb[0].mxu0
    %v1726 = vadd.f32 0.0, %v1725
    %v1727 = vpop.f32.mrb[0].mxu0
    %v1728 = vpop.f32.mrb[0].mxu0
    %v1729 = vadd.f32 0.0, %v1728
    %v1730 = vpop.f32.mrb[0].mxu0
    %1731 = vdwg.mxu0
    %v1732 = vld [vmem:[%s3 + $0xf8] sm:$0x1]
    %v1733 = vlaneseq
    %v1734 = vshrl.u32 %v1733, 7
    %v1735 = vsub.s32 0, %v1734
    %v1736 = vrot.slane %v1732, %v1735
    %v1737 = vadd.f32 %v1726, %v1736
    %v1738 = vadd.f32 %v1729, %v1736
    %v1739 = vmax.f32 %v1737, 0.0
    %v1740 = vmax.f32 %v1738, 0.0
    %v1741 = vld [vmem:[%s3 + $0x100] sm:$0xff]
    %v1742 = vld [vmem:[%s3 + $0x108] sm:$0xff]
    %v1743 = vld [vmem:[%s3 + $0x110] sm:$0x1]
    %v1744 = vlaneseq
    %v1745 = vshrl.u32 %v1744, 7
    %v1746 = vsub.s32 0, %v1745
    %v1747 = vrot.slane %v1743, %v1746
    %v1749 = vsel %vm105, %v1739, 0
    %v1752 = vsel %vm105, %v1740, 0
    %1754 = vmatprep.subr.mxu0 0.0
    %1755 = vmatpush1.msra.mxu0 %v1741
    %1756 = vmatprep.subr.mxu0 0.0
    %1757 = vmatpush1.msra.mxu0 %v1742
    %1758 = vmatprep.subr.mxu0 0.0
    %1759 = vmatpush1.msra.mxu0 0.0
    %1760 = vmatprep.subr.mxu0 0.0
    %1761 = vmatpush1.msra.mxu0 0.0
    %1762 = vmatprep.subr.mxu0 0.0
    %1763 = vmatpush1.msra.mxu0 0.0
    %1764 = vmatprep.subr.mxu0 0.0
    %1765 = vmatpush1.msra.mxu0 0.0
    %1766 = vmatprep.subr.mxu0 0.0
    %1767 = vmatpush1.msra.mxu0 0.0
    %1768 = vmatprep.subr.mxu0 0.0
    %1769 = vmatpush1.msra.mxu0 0.0
    %1770 = vmatprep.subr.mxu0 0.0
    %1771 = vmatpush1.msra.mxu0 0.0
    %1772 = vmatprep.subr.mxu0 0.0
    %1773 = vmatpush1.msra.mxu0 0.0
    %1774 = vmatprep.subr.mxu0 0.0
    %1775 = vmatpush1.msra.mxu0 0.0
    %1776 = vmatprep.subr.mxu0 0.0
    %1777 = vmatpush1.msra.mxu0 0.0
    %1778 = vmatprep.subr.mxu0 0.0
    %1779 = vmatpush1.msra.mxu0 0.0
    %1780 = vmatprep.subr.mxu0 0.0
    %1781 = vmatpush1.msra.mxu0 0.0
    %1782 = vmatprep.subr.mxu0 0.0
    %1783 = vmatpush1.msra.mxu0 0.0
    %1784 = vmatprep.subr.mxu0 0.0
    %1785 = vmatpush1.msra.mxu0 0.0
    %1786 = vmatprep.subr.mxu0 0.0
    %1787 = vmatpush1.msra.mxu0 0.0
    %1788 = vmatprep.subr.mxu0 0.0
    %1789 = vmatpush1.msra.mxu0 0.0
    %1790 = vmatprep.subr.mxu0 0.0
    %1791 = vmatpush1.msra.mxu0 0.0
    %1792 = vmatprep.subr.mxu0 0.0
    %1793 = vmatpush1.msra.mxu0 0.0
    %1794 = vmatprep.subr.mxu0 0.0
    %1795 = vmatpush1.msra.mxu0 0.0
    %1796 = vmatprep.subr.mxu0 0.0
    %1797 = vmatpush1.msra.mxu0 0.0
    %1798 = vmatprep.subr.mxu0 0.0
    %1799 = vmatpush1.msra.mxu0 0.0
    %1800 = vmatprep.subr.mxu0 0.0
    %1801 = vmatpush1.msra.mxu0 0.0
    %1802 = vmatprep.subr.mxu0 0.0
    %1803 = vmatpush1.msra.mxu0 0.0
    %1804 = vmatprep.subr.mxu0 0.0
    %1805 = vmatpush1.msra.mxu0 0.0
    %1806 = vmatprep.subr.mxu0 0.0
    %1807 = vmatpush1.msra.mxu0 0.0
    %1808 = vmatprep.subr.mxu0 0.0
    %1809 = vmatpush1.msra.mxu0 0.0
    %1810 = vmatprep.subr.mxu0 0.0
    %1811 = vmatpush1.msra.mxu0 0.0
    %1812 = vmatprep.subr.mxu0 0.0
    %1813 = vmatpush1.msra.mxu0 0.0
    %1814 = vmatprep.subr.mxu0 0.0
    %1815 = vmatpush1.msra.mxu0 0.0
    %1816 = vmatprep.subr.mxu0 0.0
    %1817 = vmatpush1.msra.mxu0 0.0
    %1818 = vmatprep.mubr.f32.mxu0 0.0
    %1819 = vmatmul.mubr.f32.gmra.mrb[0].mxu0 %v1749
    %v1820 = vpop.f32.mrb[0].mxu0
    %v1821 = vadd.f32 %v1747, %v1820
    %v1822 = vpop.f32.mrb[0].mxu0
    %1823 = vmatprep.mubr.f32.mxu0 0.0
    %1824 = vmatmul.mubr.f32.gmra.mrb[0].mxu0 %v1752
    %v1825 = vpop.f32.mrb[0].mxu0
    %v1826 = vadd.f32 %v1747, %v1825
    %v1827 = vpop.f32.mrb[0].mxu0
    %1828 = vdwg.mxu0
    %v1829 = vmax.f32 %v1821, 0.0
    %v1830 = vmax.f32 %v1826, 0.0
    %v1831 = vld [vmem:[%s3 + $0x118] sm:$0xff]
    %v1832 = vld [vmem:[%s3 + $0x120] sm:$0xff]
    %v1833 = vld [vmem:[%s3 + $0x128] sm:$0x1]
    %v1834 = vlaneseq
    %v1835 = vshrl.u32 %v1834, 7
    %v1836 = vsub.s32 0, %v1835
    %v1837 = vrot.slane %v1833, %v1836
    %v1839 = vsel %vm105, %v1829, 0
    %v1842 = vsel %vm105, %v1830, 0
    %1844 = vmatprep.subr.mxu0 0.0
    %1845 = vmatpush1.msra.mxu0 %v1831
    %1846 = vmatprep.subr.mxu0 0.0
    %1847 = vmatpush1.msra.mxu0 %v1832
    %1848 = vmatprep.subr.mxu0 0.0
    %1849 = vmatpush1.msra.mxu0 0.0
    %1850 = vmatprep.subr.mxu0 0.0
    %1851 = vmatpush1.msra.mxu0 0.0
    %1852 = vmatprep.subr.mxu0 0.0
    %1853 = vmatpush1.msra.mxu0 0.0
    %1854 = vmatprep.subr.mxu0 0.0
    %1855 = vmatpush1.msra.mxu0 0.0
    %1856 = vmatprep.subr.mxu0 0.0
    %1857 = vmatpush1.msra.mxu0 0.0
    %1858 = vmatprep.subr.mxu0 0.0
    %1859 = vmatpush1.msra.mxu0 0.0
    %1860 = vmatprep.subr.mxu0 0.0
    %1861 = vmatpush1.msra.mxu0 0.0
    %1862 = vmatprep.subr.mxu0 0.0
    %1863 = vmatpush1.msra.mxu0 0.0
    %1864 = vmatprep.subr.mxu0 0.0
    %1865 = vmatpush1.msra.mxu0 0.0
    %1866 = vmatprep.subr.mxu0 0.0
    %1867 = vmatpush1.msra.mxu0 0.0
    %1868 = vmatprep.subr.mxu0 0.0
    %1869 = vmatpush1.msra.mxu0 0.0
    %1870 = vmatprep.subr.mxu0 0.0
    %1871 = vmatpush1.msra.mxu0 0.0
    %1872 = vmatprep.subr.mxu0 0.0
    %1873 = vmatpush1.msra.mxu0 0.0
    %1874 = vmatprep.subr.mxu0 0.0
    %1875 = vmatpush1.msra.mxu0 0.0
    %1876 = vmatprep.subr.mxu0 0.0
    %1877 = vmatpush1.msra.mxu0 0.0
    %1878 = vmatprep.subr.mxu0 0.0
    %1879 = vmatpush1.msra.mxu0 0.0
    %1880 = vmatprep.subr.mxu0 0.0
    %1881 = vmatpush1.msra.mxu0 0.0
    %1882 = vmatprep.subr.mxu0 0.0
    %1883 = vmatpush1.msra.mxu0 0.0
    %1884 = vmatprep.subr.mxu0 0.0
    %1885 = vmatpush1.msra.mxu0 0.0
    %1886 = vmatprep.subr.mxu0 0.0
    %1887 = vmatpush1.msra.mxu0 0.0
    %1888 = vmatprep.subr.mxu0 0.0
    %1889 = vmatpush1.msra.mxu0 0.0
    %1890 = vmatprep.subr.mxu0 0.0
    %1891 = vmatpush1.msra.mxu0 0.0
    %1892 = vmatprep.subr.mxu0 0.0
    %1893 = vmatpush1.msra.mxu0 0.0
    %1894 = vmatprep.subr.mxu0 0.0
    %1895 = vmatpush1.msra.mxu0 0.0
    %1896 = vmatprep.subr.mxu0 0.0
    %1897 = vmatpush1.msra.mxu0 0.0
    %1898 = vmatprep.subr.mxu0 0.0
    %1899 = vmatpush1.msra.mxu0 0.0
    %1900 = vmatprep.subr.mxu0 0.0
    %1901 = vmatpush1.msra.mxu0 0.0
    %1902 = vmatprep.subr.mxu0 0.0
    %1903 = vmatpush1.msra.mxu0 0.0
    %1904 = vmatprep.subr.mxu0 0.0
    %1905 = vmatpush1.msra.mxu0 0.0
    %1906 = vmatprep.subr.mxu0 0.0
    %1907 = vmatpush1.msra.mxu0 0.0
    %1908 = vmatprep.mubr.f32.mxu0 0.0
    %1909 = vmatmul.mubr.f32.gmra.mrb[0].mxu0 %v1839
    %v1910 = vpop.f32.mrb[0].mxu0
    %v1911 = vadd.f32 %v1837, %v1910
    %v1912 = vpop.f32.mrb[0].mxu0
    %1913 = vmatprep.mubr.f32.mxu0 0.0
    %1914 = vmatmul.mubr.f32.gmra.mrb[0].mxu0 %v1842
    %v1915 = vpop.f32.mrb[0].mxu0
    %v1916 = vadd.f32 %v1837, %v1915
    %v1917 = vpop.f32.mrb[0].mxu0
    %1918 = vdwg.mxu0
    %v1919 = vmax.f32 %v1911, 0.0
    %v1920 = vmax.f32 %v1916, 0.0
    %v1921 = vxor.u32 %v1919, 2147483648
    %v1922 = vxor.u32 %v1920, 2147483648
    %v1923 = vmul.f32 %v1921, 1.442695
    %v1924 = vpow.pop %v1923
    %v1925 = vmul.f32 %v1922, 1.442695
    %v1926 = vpow.pop %v1925
    %v1927 = vadd.f32 %v1924, 1.0
    %v1928 = vadd.f32 %v1926, 1.0
    %v1929 = vrcp.pop %v1927
    %v1930 = vmul.f32 1.0, %v1929
    %v1931 = vrcp.pop %v1928
    %v1932 = vmul.f32 1.0, %v1931
    %1935 = vrot.lane.b32.xlu0 %v1930, 16
    %v1936 = vpop.permute.xlu0 %1935
    %1937 = vrot.lane.b32.xlu0 %v1932, 16
    %v1938 = vpop.permute.xlu0 %1937
    %v1941 = vmul.f32 %v1726, %v1936
    %v1942 = vmul.f32 %v1729, %v1938
    %v1943 = vpack.c.bf16 %v1942, %v1941
    %1945 = vrot.lane.b32.xlu0 %v1943, 112
    %v1946 = vpop.permute.xlu0 %1945
    %1948 = vmatprep.subr.bf16.mxu0 0
    %1949 = vmatpush1.bf16.msra.mxu0 %v1946
    %1950 = vmatprep.subr.bf16.mxu0 0
    %1951 = vmatpush1.bf16.msra.mxu0 0
    %1952 = vmatprep.subr.bf16.mxu0 0
    %1953 = vmatpush1.bf16.msra.mxu0 0
    %1954 = vmatprep.subr.bf16.mxu0 0
    %1955 = vmatpush1.bf16.msra.mxu0 0
    %1956 = vmatprep.subr.bf16.mxu0 0
    %1957 = vmatpush1.bf16.msra.mxu0 0
    %1958 = vmatprep.subr.bf16.mxu0 0
    %1959 = vmatpush1.bf16.msra.mxu0 0
    %1960 = vmatprep.subr.bf16.mxu0 0
    %1961 = vmatpush1.bf16.msra.mxu0 0
    %1962 = vmatprep.subr.bf16.mxu0 0
    %1963 = vmatpush1.bf16.msra.mxu0 0
    %1964 = vmatprep.subr.bf16.mxu0 0
    %1965 = vmatpush1.bf16.msra.mxu0 0
    %1966 = vmatprep.subr.bf16.mxu0 0
    %1967 = vmatpush1.bf16.msra.mxu0 0
    %1968 = vmatprep.subr.bf16.mxu0 0
    %1969 = vmatpush1.bf16.msra.mxu0 0
    %1970 = vmatprep.subr.bf16.mxu0 0
    %1971 = vmatpush1.bf16.msra.mxu0 0
    %1972 = vmatprep.subr.bf16.mxu0 0
    %1973 = vmatpush1.bf16.msra.mxu0 0
    %1974 = vmatprep.subr.bf16.mxu0 0
    %1975 = vmatpush1.bf16.msra.mxu0 0
    %1976 = vmatprep.subr.bf16.mxu0 0
    %1977 = vmatpush1.bf16.msra.mxu0 0
    %1978 = vmatprep.subr.bf16.mxu0 0
    %1979 = vmatpush1.bf16.msra.mxu0 0
    %1980 = vmatprep.mubr.bf16.mxu0 0
    %1981 = vmatmul.mubr.bf16.gmra.mrb[0].mxu0 %v532
    %v1982 = vpop.f32.mrb[0].mxu0
    %v1983 = vadd.f32 0.0, %v1982
    %v1984 = vpop.f32.mrb[0].mxu0
    %v1985 = vpop.f32.mrb[0].mxu0
    %v1986 = vpop.f32.mrb[0].mxu0
    %1987 = vdwg.mxu0
    %1989 = vrot.lane.b32.xlu0 %v1983, 16
    %v1990 = vpop.permute.xlu0 %1989
    %v1992 = vsel %vm105, %v1531, %v1990
    %v1993 = vld [vmem:[%s3 + $0x1e0] sm:$0xff]
    %v1994 = vld [vmem:[%s3 + $0x1e8] sm:$0xff]
    %v1995 = vld [vmem:[%s3 + $0x1f0] sm:$0xff]
    %v1996 = vld [vmem:[%s3 + $0x1f8] sm:$0xff]
    %v1997 = vld [vmem:[%s3 + $0x200] sm:$0x1]
    %v1998 = vlaneseq
    %v1999 = vshrl.u32 %v1998, 7
    %v2000 = vsub.s32 0, %v1999
    %v2001 = vrot.slane %v1997, %v2000
    %v2003 = vsel %vm179, %v1992, 0
    %2005 = vmatprep.subr.mxu0 0.0
    %2006 = vmatpush1.msra.mxu0 %v1993
    %2007 = vmatprep.subr.mxu0 0.0
    %2008 = vmatpush1.msra.mxu0 %v1994
    %2009 = vmatprep.subr.mxu0 0.0
    %2010 = vmatpush1.msra.mxu0 %v1995
    %2011 = vmatprep.subr.mxu0 0.0
    %2012 = vmatpush1.msra.mxu0 %v1996
    %2013 = vmatprep.subr.mxu0 0.0
    %2014 = vmatpush1.msra.mxu0 0.0
    %2015 = vmatprep.subr.mxu0 0.0
    %2016 = vmatpush1.msra.mxu0 0.0
    %2017 = vmatprep.subr.mxu0 0.0
    %2018 = vmatpush1.msra.mxu0 0.0
    %2019 = vmatprep.subr.mxu0 0.0
    %2020 = vmatpush1.msra.mxu0 0.0
    %2021 = vmatprep.subr.mxu0 0.0
    %2022 = vmatpush1.msra.mxu0 0.0
    %2023 = vmatprep.subr.mxu0 0.0
    %2024 = vmatpush1.msra.mxu0 0.0
    %2025 = vmatprep.subr.mxu0 0.0
    %2026 = vmatpush1.msra.mxu0 0.0
    %2027 = vmatprep.subr.mxu0 0.0
    %2028 = vmatpush1.msra.mxu0 0.0
    %2029 = vmatprep.subr.mxu0 0.0
    %2030 = vmatpush1.msra.mxu0 0.0
    %2031 = vmatprep.subr.mxu0 0.0
    %2032 = vmatpush1.msra.mxu0 0.0
    %2033 = vmatprep.subr.mxu0 0.0
    %2034 = vmatpush1.msra.mxu0 0.0
    %2035 = vmatprep.subr.mxu0 0.0
    %2036 = vmatpush1.msra.mxu0 0.0
    %2037 = vmatprep.subr.mxu0 0.0
    %2038 = vmatpush1.msra.mxu0 0.0
    %2039 = vmatprep.subr.mxu0 0.0
    %2040 = vmatpush1.msra.mxu0 0.0
    %2041 = vmatprep.subr.mxu0 0.0
    %2042 = vmatpush1.msra.mxu0 0.0
    %2043 = vmatprep.subr.mxu0 0.0
    %2044 = vmatpush1.msra.mxu0 0.0
    %2045 = vmatprep.subr.mxu0 0.0
    %2046 = vmatpush1.msra.mxu0 0.0
    %2047 = vmatprep.subr.mxu0 0.0
    %2048 = vmatpush1.msra.mxu0 0.0
    %2049 = vmatprep.subr.mxu0 0.0
    %2050 = vmatpush1.msra.mxu0 0.0
    %2051 = vmatprep.subr.mxu0 0.0
    %2052 = vmatpush1.msra.mxu0 0.0
    %2053 = vmatprep.subr.mxu0 0.0
    %2054 = vmatpush1.msra.mxu0 0.0
    %2055 = vmatprep.subr.mxu0 0.0
    %2056 = vmatpush1.msra.mxu0 0.0
    %2057 = vmatprep.subr.mxu0 0.0
    %2058 = vmatpush1.msra.mxu0 0.0
    %2059 = vmatprep.subr.mxu0 0.0
    %2060 = vmatpush1.msra.mxu0 0.0
    %2061 = vmatprep.subr.mxu0 0.0
    %2062 = vmatpush1.msra.mxu0 0.0
    %2063 = vmatprep.subr.mxu0 0.0
    %2064 = vmatpush1.msra.mxu0 0.0
    %2065 = vmatprep.subr.mxu0 0.0
    %2066 = vmatpush1.msra.mxu0 0.0
    %2067 = vmatprep.subr.mxu0 0.0
    %2068 = vmatpush1.msra.mxu0 0.0
    %2069 = vmatprep.mubr.f32.mxu0 0.0
    %2070 = vmatmul.mubr.f32.gmra.mrb[0].mxu0 %v2003
    %v2071 = vpop.f32.mrb[0].mxu0
    %v2072 = vadd.f32 %v2001, %v2071
    %v2073 = vpop.f32.mrb[0].mxu0
    %2074 = vdwg.mxu0
    %v2075 = vmax.f32 %v2072, 0.0
    %v2076 = vld [vmem:[%s3 + $0x208] sm:$0xff]
    %v2077 = vld [vmem:[%s3 + $0x210] sm:$0xff]
    %v2078 = vld [vmem:[%s3 + $0x218] sm:$0x1]
    %v2079 = vlaneseq
    %v2080 = vshrl.u32 %v2079, 7
    %v2081 = vsub.s32 0, %v2080
    %v2082 = vrot.slane %v2078, %v2081
    %v2084 = vsel %vm105, %v2075, 0
    %2086 = vmatprep.subr.mxu0 0.0
    %2087 = vmatpush1.msra.mxu0 %v2076
    %2088 = vmatprep.subr.mxu0 0.0
    %2089 = vmatpush1.msra.mxu0 %v2077
    %2090 = vmatprep.subr.mxu0 0.0
    %2091 = vmatpush1.msra.mxu0 0.0
    %2092 = vmatprep.subr.mxu0 0.0
    %2093 = vmatpush1.msra.mxu0 0.0
    %2094 = vmatprep.subr.mxu0 0.0
    %2095 = vmatpush1.msra.mxu0 0.0
    %2096 = vmatprep.subr.mxu0 0.0
    %2097 = vmatpush1.msra.mxu0 0.0
    %2098 = vmatprep.subr.mxu0 0.0
    %2099 = vmatpush1.msra.mxu0 0.0
    %2100 = vmatprep.subr.mxu0 0.0
    %2101 = vmatpush1.msra.mxu0 0.0
    %2102 = vmatprep.subr.mxu0 0.0
    %2103 = vmatpush1.msra.mxu0 0.0
    %2104 = vmatprep.subr.mxu0 0.0
    %2105 = vmatpush1.msra.mxu0 0.0
    %2106 = vmatprep.subr.mxu0 0.0
    %2107 = vmatpush1.msra.mxu0 0.0
    %2108 = vmatprep.subr.mxu0 0.0
    %2109 = vmatpush1.msra.mxu0 0.0
    %2110 = vmatprep.subr.mxu0 0.0
    %2111 = vmatpush1.msra.mxu0 0.0
    %2112 = vmatprep.subr.mxu0 0.0
    %2113 = vmatpush1.msra.mxu0 0.0
    %2114 = vmatprep.subr.mxu0 0.0
    %2115 = vmatpush1.msra.mxu0 0.0
    %2116 = vmatprep.subr.mxu0 0.0
    %2117 = vmatpush1.msra.mxu0 0.0
    %2118 = vmatprep.subr.mxu0 0.0
    %2119 = vmatpush1.msra.mxu0 0.0
    %2120 = vmatprep.subr.mxu0 0.0
    %2121 = vmatpush1.msra.mxu0 0.0
    %2122 = vmatprep.subr.mxu0 0.0
    %2123 = vmatpush1.msra.mxu0 0.0
    %2124 = vmatprep.subr.mxu0 0.0
    %2125 = vmatpush1.msra.mxu0 0.0
    %2126 = vmatprep.subr.mxu0 0.0
    %2127 = vmatpush1.msra.mxu0 0.0
    %2128 = vmatprep.subr.mxu0 0.0
    %2129 = vmatpush1.msra.mxu0 0.0
    %2130 = vmatprep.subr.mxu0 0.0
    %2131 = vmatpush1.msra.mxu0 0.0
    %2132 = vmatprep.subr.mxu0 0.0
    %2133 = vmatpush1.msra.mxu0 0.0
    %2134 = vmatprep.subr.mxu0 0.0
    %2135 = vmatpush1.msra.mxu0 0.0
    %2136 = vmatprep.subr.mxu0 0.0
    %2137 = vmatpush1.msra.mxu0 0.0
    %2138 = vmatprep.subr.mxu0 0.0
    %2139 = vmatpush1.msra.mxu0 0.0
    %2140 = vmatprep.subr.mxu0 0.0
    %2141 = vmatpush1.msra.mxu0 0.0
    %2142 = vmatprep.subr.mxu0 0.0
    %2143 = vmatpush1.msra.mxu0 0.0
    %2144 = vmatprep.subr.mxu0 0.0
    %2145 = vmatpush1.msra.mxu0 0.0
    %2146 = vmatprep.subr.mxu0 0.0
    %2147 = vmatpush1.msra.mxu0 0.0
    %2148 = vmatprep.subr.mxu0 0.0
    %2149 = vmatpush1.msra.mxu0 0.0
    %2150 = vmatprep.mubr.f32.mxu0 0.0
    %2151 = vmatmul.mubr.f32.gmra.mrb[0].mxu0 %v2084
    %v2152 = vpop.f32.mrb[0].mxu0
    %v2153 = vadd.f32 %v2082, %v2152
    %v2154 = vpop.f32.mrb[0].mxu0
    %2155 = vdwg.mxu0
    %v2156 = vmax.f32 %v2153, 0.0
    %v2157 = vld [vmem:[%s3 + $0x220] sm:$0xff]
    %v2158 = vld [vmem:[%s3 + $0x228] sm:$0xff]
    %v2159 = vld [vmem:[%s3 + $0x230] sm:$0x1]
    %v2160 = vlaneseq
    %v2161 = vshrl.u32 %v2160, 7
    %v2162 = vsub.s32 0, %v2161
    %v2163 = vrot.slane %v2159, %v2162
    %v2165 = vsel %vm105, %v2156, 0
    %2167 = vmatprep.subr.mxu0 0.0
    %2168 = vmatpush1.msra.mxu0 %v2157
    %2169 = vmatprep.subr.mxu0 0.0
    %2170 = vmatpush1.msra.mxu0 %v2158
    %2171 = vmatprep.subr.mxu0 0.0
    %2172 = vmatpush1.msra.mxu0 0.0
    %2173 = vmatprep.subr.mxu0 0.0
    %2174 = vmatpush1.msra.mxu0 0.0
    %2175 = vmatprep.subr.mxu0 0.0
    %2176 = vmatpush1.msra.mxu0 0.0
    %2177 = vmatprep.subr.mxu0 0.0
    %2178 = vmatpush1.msra.mxu0 0.0
    %2179 = vmatprep.subr.mxu0 0.0
    %2180 = vmatpush1.msra.mxu0 0.0
    %2181 = vmatprep.subr.mxu0 0.0
    %2182 = vmatpush1.msra.mxu0 0.0
    %2183 = vmatprep.subr.mxu0 0.0
    %2184 = vmatpush1.msra.mxu0 0.0
    %2185 = vmatprep.subr.mxu0 0.0
    %2186 = vmatpush1.msra.mxu0 0.0
    %2187 = vmatprep.subr.mxu0 0.0
    %2188 = vmatpush1.msra.mxu0 0.0
    %2189 = vmatprep.subr.mxu0 0.0
    %2190 = vmatpush1.msra.mxu0 0.0
    %2191 = vmatprep.subr.mxu0 0.0
    %2192 = vmatpush1.msra.mxu0 0.0
    %2193 = vmatprep.subr.mxu0 0.0
    %2194 = vmatpush1.msra.mxu0 0.0
    %2195 = vmatprep.subr.mxu0 0.0
    %2196 = vmatpush1.msra.mxu0 0.0
    %2197 = vmatprep.subr.mxu0 0.0
    %2198 = vmatpush1.msra.mxu0 0.0
    %2199 = vmatprep.subr.mxu0 0.0
    %2200 = vmatpush1.msra.mxu0 0.0
    %2201 = vmatprep.subr.mxu0 0.0
    %2202 = vmatpush1.msra.mxu0 0.0
    %2203 = vmatprep.subr.mxu0 0.0
    %2204 = vmatpush1.msra.mxu0 0.0
    %2205 = vmatprep.subr.mxu0 0.0
    %2206 = vmatpush1.msra.mxu0 0.0
    %2207 = vmatprep.subr.mxu0 0.0
    %2208 = vmatpush1.msra.mxu0 0.0
    %2209 = vmatprep.subr.mxu0 0.0
    %2210 = vmatpush1.msra.mxu0 0.0
    %2211 = vmatprep.subr.mxu0 0.0
    %2212 = vmatpush1.msra.mxu0 0.0
    %2213 = vmatprep.subr.mxu0 0.0
    %2214 = vmatpush1.msra.mxu0 0.0
    %2215 = vmatprep.subr.mxu0 0.0
    %2216 = vmatpush1.msra.mxu0 0.0
    %2217 = vmatprep.subr.mxu0 0.0
    %2218 = vmatpush1.msra.mxu0 0.0
    %2219 = vmatprep.subr.mxu0 0.0
    %2220 = vmatpush1.msra.mxu0 0.0
    %2221 = vmatprep.subr.mxu0 0.0
    %2222 = vmatpush1.msra.mxu0 0.0
    %2223 = vmatprep.subr.mxu0 0.0
    %2224 = vmatpush1.msra.mxu0 0.0
    %2225 = vmatprep.subr.mxu0 0.0
    %2226 = vmatpush1.msra.mxu0 0.0
    %2227 = vmatprep.subr.mxu0 0.0
    %2228 = vmatpush1.msra.mxu0 0.0
    %2229 = vmatprep.subr.mxu0 0.0
    %2230 = vmatpush1.msra.mxu0 0.0
    %2231 = vmatprep.mubr.f32.mxu0 0.0
    %2232 = vmatmul.mubr.f32.gmra.mrb[0].mxu0 %v2165
    %v2233 = vpop.f32.mrb[0].mxu0
    %v2234 = vadd.f32 %v2163, %v2233
    %v2235 = vpop.f32.mrb[0].mxu0
    %2236 = vdwg.mxu0
    %v2237 = vxor.u32 %v2234, 2147483648
    %v2238 = vmul.f32 %v2237, 1.442695
    %v2239 = vpow.pop %v2238
    %v2240 = vadd.f32 %v2239, 1.0
    %v2241 = vrcp.pop %v2240
    %v2242 = vmul.f32 1.0, %v2241
    %2243 = vst.msk [vmem:[#allocation3] sm:$0xff] %vm105, %v2242
    // Predicated region
    $region18: #{tpu_custom_call.1} parent=1 // pred_check
      _
    $region19: #{tpu_custom_call.1} parent=1 // pred_check_branch
      %2245 = sbr.rel (0) target = $region21
    $region20: #{tpu_custom_call.1} parent=1 // pred_region
      %s2247 = ssub.s32 128, 128
      %2248 = vsyncadd [#allocation4], %s2247
      %s2250 = sshll.u32 [#allocation3], 4
      %s2251 = int_to_ptr.vmem [resolvable:$true] %s2250
      %2253 = dma.vmem_to_hbm [thread:$0]  %s2251, 128, %s4, [#allocation4]
    $region21: #{tpu_custom_call.1} parent=1 // pred_fallthru
      _
    // Predicated region
    $region22: #{tpu_custom_call.1} parent=1 // pred_check
      _
    $region23: #{tpu_custom_call.1} parent=1 // pred_check_branch
      %2255 = sbr.rel (0) target = $region25
    $region24: #{tpu_custom_call.1} parent=1 // pred_region
      %2256 = dma.done [#allocation4], 128
    $region25: #{tpu_custom_call.1} parent=1 // pred_fallthru
      _
    %2257 = vsyncpa [#allocation4], 1

</llo_original>
